<compile_context>
chip_gen: v6e
topology: v6e:2x2x1
jax: 0.10.0
libtpu: 0.0.40
codegen_flags: <defaults>
</compile_context>

<pallas_src>
import functools

import jax
import jax.numpy as jnp
from jax.experimental import pallas as pl
from jax.experimental.pallas import tpu as pltpu

LEAKY_SLOPE = 0.01  # nn.LeakyReLU default negative_slope


def _round_up(x, m):
    return ((x + m - 1) // m) * m


def _nonlinear_bin_kernel(inp_ref, w1_ref, b1_ref, w2_ref, b2_ref, out_ref, *,
                          nc_chunk):
    inp = inp_ref[...]                        # (bb, in_nc) f32
    nc = w1_ref.shape[1]
    bb = inp.shape[0]
    f_pad = out_ref.shape[1]

    acc = jnp.zeros((bb, f_pad), jnp.float32)

    # Static (trace-time) loop over 128-aligned nc chunks; both matmuls hit the
    # MXU, LeakyReLU runs on the VPU between them while the chunk is hot, and
    # the full (bb, nc) hidden never round-trips through VMEM.
    for c0 in range(0, nc, nc_chunk):
        c1 = min(c0 + nc_chunk, nc)
        xc = jnp.dot(inp, w1_ref[:, c0:c1],            # layer 1 partial (MXU)
                     preferred_element_type=jnp.float32)
        xc = xc + b1_ref[:, c0:c1]
        xc = jnp.where(xc >= 0, xc, LEAKY_SLOPE * xc)  # LeakyReLU, f32 (v5e-safe)
        xc = xc.astype(w2_ref.dtype)                   # bf16 operands, f32 acc
        acc = acc + jnp.dot(xc, w2_ref[c0:c1, :],      # layer 2 partial (MXU)
                            preferred_element_type=jnp.float32)

    out_ref[...] = (acc + b2_ref[...]).astype(out_ref.dtype)


def nonlinear_bin(inp, w1, b1, w2, b2, num_sheets, num_bins, *,
                  block_b=512, nc_chunk=512, use_bf16=True):
    """Forward pass of NonLinearBinModel.

    inp: (B, in_nc) f32.  w1: (in_nc, nc) f32 (PyTorch weight transposed).
    b1: (1, nc) f32.  w2: (nc, num_sheets*num_bins) f32 (transposed).  b2: (1, F) f32.
    Returns (B, num_sheets, num_bins) f32.
    """
    B, in_nc = inp.shape
    nc = w1.shape[1]
    F = num_sheets * num_bins
    assert w2.shape == (nc, F) and b1.shape == (1, nc) and b2.shape == (1, F)

    # Lane-dense output: pad F up to a multiple of 128 so writeback uses
    # unmasked vst + contiguous DMA. Padded columns are zero and sliced off.
    f_pad = max(128, _round_up(F, 128))
    if f_pad != F:
        w2 = jnp.pad(w2, ((0, 0), (0, f_pad - F)))
        b2 = jnp.pad(b2, ((0, 0), (0, f_pad - F)))

    # One large batch tile (single grid step for small B). Large B naturally
    # splits into multiple "parallel" steps (keeps both v7x TCs busy).
    bb = _round_up(min(block_b, _round_up(B, 8)), 8)
    padded_b = _round_up(B, bb)
    if padded_b != B:
        inp = jnp.pad(inp, ((0, padded_b - B), (0, 0)))
    grid = (padded_b // bb,)

    # bf16 operands for the layer-2 matmul (f32 accumulation) and halved w2 DMA.
    w2_in = w2.astype(jnp.bfloat16) if use_bf16 else w2
    chunk = min(nc_chunk, nc)

    kernel = functools.partial(_nonlinear_bin_kernel, nc_chunk=chunk)

    flops = 2 * padded_b * nc * (in_nc + f_pad)
    bytes_accessed = (inp.size * 4 + w1.size * 4 + b1.size * 4
                      + w2_in.size * w2_in.dtype.itemsize + b2.size * 4
                      + padded_b * f_pad * 4)

    out = pl.pallas_call(
        kernel,
        out_shape=jax.ShapeDtypeStruct((padded_b, f_pad), jnp.float32),
        grid_spec=pl.GridSpec(
            grid=grid,
            in_specs=[
                pl.BlockSpec((bb, in_nc), lambda i: (i, 0)),   # inp (batch-tiled)
                pl.BlockSpec((in_nc, nc), lambda i: (0, 0)),   # w1 (resident)
                pl.BlockSpec((1, nc), lambda i: (0, 0)),       # b1
                pl.BlockSpec((nc, f_pad), lambda i: (0, 0)),   # w2 (resident)
                pl.BlockSpec((1, f_pad), lambda i: (0, 0)),    # b2
            ],
            out_specs=pl.BlockSpec((bb, f_pad), lambda i: (i, 0)),
        ),
        compiler_params=pltpu.CompilerParams(
            dimension_semantics=("parallel",),
            vmem_limit_bytes=32 * 1024 * 1024,
        ),
        cost_estimate=pl.CostEstimate(
            flops=flops, transcendentals=0, bytes_accessed=bytes_accessed),
    )(inp, w1, b1, w2_in, b2)

    return out[:B, :F].reshape(B, num_sheets, num_bins)


def reference(inp, w1, b1, w2, b2, num_sheets, num_bins):
    hp = jax.lax.Precision.HIGHEST
    x = jnp.dot(inp, w1, precision=hp) + b1
    x = jnp.where(x >= 0, x, LEAKY_SLOPE * x)
    y = jnp.dot(x, w2, precision=hp) + b2
    return y.reshape(-1, num_sheets, num_bins)


if __name__ == "__main__":
    # Module defaults: in_nc=6, nc=1600, num_bins=26, num_sheets=4; small batch.
    B, in_nc, nc, num_bins, num_sheets = 32, 6, 1600, 26, 4
    F = num_sheets * num_bins

    key = jax.random.PRNGKey(0)
    k1, k2, k3, k4, k5 = jax.random.split(key, 5)

    # PyTorch Linear stores (out, in); we keep the transposed (in, out) layout.
    w1 = jax.random.normal(k1, (in_nc, nc), jnp.float32) * 0.1
    b1 = jax.random.normal(k2, (1, nc), jnp.float32) * 0.1
    w2 = jax.random.normal(k3, (nc, F), jnp.float32) * 0.05
    b2 = jax.random.normal(k4, (1, F), jnp.float32) * 0.05
    inp = jax.random.normal(k5, (B, in_nc), jnp.float32)

    ref = reference(inp, w1, b1, w2, b2, num_sheets, num_bins)

    # Default path: bf16 operands for the second matmul, f32 accumulate.
    out_bf16 = jax.block_until_ready(
        nonlinear_bin(inp, w1, b1, w2, b2, num_sheets, num_bins, use_bf16=True))
    assert out_bf16.shape == (B, num_sheets, num_bins)
    assert jnp.allclose(out_bf16, ref, atol=2e-2, rtol=2e-2), "bf16 path mismatch"

    # Pure f32 path (same kernel, no bf16 cast of w2 / x).
    out_f32 = jax.block_until_ready(
        nonlinear_bin(inp, w1, b1, w2, b2, num_sheets, num_bins, use_bf16=False))
    assert out_f32.shape == (B, num_sheets, num_bins)
    assert jnp.allclose(out_f32, ref, atol=2e-2, rtol=2e-2), "f32 path mismatch"

    print("KERNEL_OK")
</pallas_src>

<mosaic_0001>
module attributes {stable_mosaic.version = 11 : i64} {
  func.func @_nonlinear_bin_kernel(%arg0: i32, %arg1: memref<32x6xf32, #tpu.memory_space<vmem>>, %arg2: memref<6x1600xf32, #tpu.memory_space<vmem>>, %arg3: memref<1x1600xf32, #tpu.memory_space<vmem>>, %arg4: memref<1600x128xbf16, #tpu.memory_space<vmem>>, %arg5: memref<1x128xf32, #tpu.memory_space<vmem>>, %arg6: memref<32x128xf32, #tpu.memory_space<vmem>>) attributes {dimension_semantics = [#tpu.dimension_semantics<parallel>], iteration_bounds = array<i64: 1>, scalar_prefetch = 0 : i64, scratch_operands = 0 : i64, tpu.core_type = #tpu.core_type<tc>, window_params = [{transform_indices = @transform_0, window_bounds = array<i64: 32, 6>}, {pipeline_mode = #tpu.pipeline_mode<synchronous>, transform_indices = @transform_1, window_bounds = array<i64: 6, 1600>}, {pipeline_mode = #tpu.pipeline_mode<synchronous>, transform_indices = @transform_2, window_bounds = array<i64: 1, 1600>}, {pipeline_mode = #tpu.pipeline_mode<synchronous>, transform_indices = @transform_3, window_bounds = array<i64: 1600, 128>}, {pipeline_mode = #tpu.pipeline_mode<synchronous>, transform_indices = @transform_4, window_bounds = array<i64: 1, 128>}, {transform_indices = @transform_5, window_bounds = array<i64: 32, 128>}]} {
    %c0 = arith.constant 0 : index
    %c0_0 = arith.constant 0 : index
    %0 = vector.load %arg1[%c0, %c0_0] : memref<32x6xf32, #tpu.memory_space<vmem>>, vector<32x6xf32>
    %cst = arith.constant 0.000000e+00 : f32
    %1 = vector.broadcast %cst : f32 to vector<32x128xf32>
    %c0_1 = arith.constant 0 : index
    %c0_2 = arith.constant 0 : index
    %2 = vector.load %arg2[%c0_1, %c0_2] : memref<6x1600xf32, #tpu.memory_space<vmem>>, vector<6x512xf32>
    %cst_3 = arith.constant dense<0.000000e+00> : vector<32x512xf32>
    %3 = tpu.matmul %0, %2, %cst_3 {dimension_numbers = #tpu.dot_dimension_numbers<[1], [0], [0], [1], [0, 0, 1, 1], [], []>} : vector<32x6xf32>, vector<6x512xf32>, vector<32x512xf32> -> vector<32x512xf32>
    %c0_4 = arith.constant 0 : index
    %c0_5 = arith.constant 0 : index
    %4 = vector.load %arg3[%c0_4, %c0_5] : memref<1x1600xf32, #tpu.memory_space<vmem>>, vector<1x512xf32>
    %5 = vector.broadcast %4 : vector<1x512xf32> to vector<32x512xf32>
    %6 = arith.addf %3, %5 : vector<32x512xf32>
    %cst_6 = arith.constant 0.000000e+00 : f32
    %7 = vector.broadcast %cst_6 : f32 to vector<32x512xf32>
    %8 = arith.cmpf oge, %6, %7 : vector<32x512xf32>
    %cst_7 = arith.constant 0.00999999977 : f32
    %9 = vector.broadcast %cst_7 : f32 to vector<32x512xf32>
    %10 = arith.mulf %9, %6 : vector<32x512xf32>
    %11 = arith.select %8, %6, %10 : vector<32x512xi1>, vector<32x512xf32>
    %12 = arith.truncf %11 : vector<32x512xf32> to vector<32x512xbf16>
    %c0_8 = arith.constant 0 : index
    %c0_9 = arith.constant 0 : index
    %13 = vector.load %arg4[%c0_8, %c0_9] : memref<1600x128xbf16, #tpu.memory_space<vmem>>, vector<512x128xbf16>
    %cst_10 = arith.constant dense<0.000000e+00> : vector<32x128xf32>
    %14 = tpu.matmul %12, %13, %cst_10 {dimension_numbers = #tpu.dot_dimension_numbers<[1], [0], [0], [1], [0, 0, 1, 1], [], []>} : vector<32x512xbf16>, vector<512x128xbf16>, vector<32x128xf32> -> vector<32x128xf32>
    %15 = arith.addf %1, %14 : vector<32x128xf32>
    %c0_11 = arith.constant 0 : index
    %c512 = arith.constant 512 : index
    %16 = vector.load %arg2[%c0_11, %c512] : memref<6x1600xf32, #tpu.memory_space<vmem>>, vector<6x512xf32>
    %cst_12 = arith.constant dense<0.000000e+00> : vector<32x512xf32>
    %17 = tpu.matmul %0, %16, %cst_12 {dimension_numbers = #tpu.dot_dimension_numbers<[1], [0], [0], [1], [0, 0, 1, 1], [], []>} : vector<32x6xf32>, vector<6x512xf32>, vector<32x512xf32> -> vector<32x512xf32>
    %c0_13 = arith.constant 0 : index
    %c512_14 = arith.constant 512 : index
    %18 = vector.load %arg3[%c0_13, %c512_14] : memref<1x1600xf32, #tpu.memory_space<vmem>>, vector<1x512xf32>
    %19 = vector.broadcast %18 : vector<1x512xf32> to vector<32x512xf32>
    %20 = arith.addf %17, %19 : vector<32x512xf32>
    %cst_15 = arith.constant 0.000000e+00 : f32
    %21 = vector.broadcast %cst_15 : f32 to vector<32x512xf32>
    %22 = arith.cmpf oge, %20, %21 : vector<32x512xf32>
    %cst_16 = arith.constant 0.00999999977 : f32
    %23 = vector.broadcast %cst_16 : f32 to vector<32x512xf32>
    %24 = arith.mulf %23, %20 : vector<32x512xf32>
    %25 = arith.select %22, %20, %24 : vector<32x512xi1>, vector<32x512xf32>
    %26 = arith.truncf %25 : vector<32x512xf32> to vector<32x512xbf16>
    %c512_17 = arith.constant 512 : index
    %c0_18 = arith.constant 0 : index
    %27 = vector.load %arg4[%c512_17, %c0_18] : memref<1600x128xbf16, #tpu.memory_space<vmem>>, vector<512x128xbf16>
    %cst_19 = arith.constant dense<0.000000e+00> : vector<32x128xf32>
    %28 = tpu.matmul %26, %27, %cst_19 {dimension_numbers = #tpu.dot_dimension_numbers<[1], [0], [0], [1], [0, 0, 1, 1], [], []>} : vector<32x512xbf16>, vector<512x128xbf16>, vector<32x128xf32> -> vector<32x128xf32>
    %29 = arith.addf %15, %28 : vector<32x128xf32>
    %c0_20 = arith.constant 0 : index
    %c1024 = arith.constant 1024 : index
    %30 = vector.load %arg2[%c0_20, %c1024] : memref<6x1600xf32, #tpu.memory_space<vmem>>, vector<6x512xf32>
    %cst_21 = arith.constant dense<0.000000e+00> : vector<32x512xf32>
    %31 = tpu.matmul %0, %30, %cst_21 {dimension_numbers = #tpu.dot_dimension_numbers<[1], [0], [0], [1], [0, 0, 1, 1], [], []>} : vector<32x6xf32>, vector<6x512xf32>, vector<32x512xf32> -> vector<32x512xf32>
    %c0_22 = arith.constant 0 : index
    %c1024_23 = arith.constant 1024 : index
    %32 = vector.load %arg3[%c0_22, %c1024_23] : memref<1x1600xf32, #tpu.memory_space<vmem>>, vector<1x512xf32>
    %33 = vector.broadcast %32 : vector<1x512xf32> to vector<32x512xf32>
    %34 = arith.addf %31, %33 : vector<32x512xf32>
    %cst_24 = arith.constant 0.000000e+00 : f32
    %35 = vector.broadcast %cst_24 : f32 to vector<32x512xf32>
    %36 = arith.cmpf oge, %34, %35 : vector<32x512xf32>
    %cst_25 = arith.constant 0.00999999977 : f32
    %37 = vector.broadcast %cst_25 : f32 to vector<32x512xf32>
    %38 = arith.mulf %37, %34 : vector<32x512xf32>
    %39 = arith.select %36, %34, %38 : vector<32x512xi1>, vector<32x512xf32>
    %40 = arith.truncf %39 : vector<32x512xf32> to vector<32x512xbf16>
    %c1024_26 = arith.constant 1024 : index
    %c0_27 = arith.constant 0 : index
    %41 = vector.load %arg4[%c1024_26, %c0_27] : memref<1600x128xbf16, #tpu.memory_space<vmem>>, vector<512x128xbf16>
    %cst_28 = arith.constant dense<0.000000e+00> : vector<32x128xf32>
    %42 = tpu.matmul %40, %41, %cst_28 {dimension_numbers = #tpu.dot_dimension_numbers<[1], [0], [0], [1], [0, 0, 1, 1], [], []>} : vector<32x512xbf16>, vector<512x128xbf16>, vector<32x128xf32> -> vector<32x128xf32>
    %43 = arith.addf %29, %42 : vector<32x128xf32>
    %c0_29 = arith.constant 0 : index
    %c1536 = arith.constant 1536 : index
    %44 = vector.load %arg2[%c0_29, %c1536] : memref<6x1600xf32, #tpu.memory_space<vmem>>, vector<6x64xf32>
    %cst_30 = arith.constant dense<0.000000e+00> : vector<32x64xf32>
    %45 = tpu.matmul %0, %44, %cst_30 {dimension_numbers = #tpu.dot_dimension_numbers<[1], [0], [0], [1], [0, 0, 1, 1], [], []>} : vector<32x6xf32>, vector<6x64xf32>, vector<32x64xf32> -> vector<32x64xf32>
    %c0_31 = arith.constant 0 : index
    %c1536_32 = arith.constant 1536 : index
    %46 = vector.load %arg3[%c0_31, %c1536_32] : memref<1x1600xf32, #tpu.memory_space<vmem>>, vector<1x64xf32>
    %47 = vector.broadcast %46 : vector<1x64xf32> to vector<32x64xf32>
    %48 = arith.addf %45, %47 : vector<32x64xf32>
    %cst_33 = arith.constant 0.000000e+00 : f32
    %49 = vector.broadcast %cst_33 : f32 to vector<32x64xf32>
    %50 = arith.cmpf oge, %48, %49 : vector<32x64xf32>
    %cst_34 = arith.constant 0.00999999977 : f32
    %51 = vector.broadcast %cst_34 : f32 to vector<32x64xf32>
    %52 = arith.mulf %51, %48 : vector<32x64xf32>
    %53 = arith.select %50, %48, %52 : vector<32x64xi1>, vector<32x64xf32>
    %54 = arith.truncf %53 : vector<32x64xf32> to vector<32x64xbf16>
    %c1536_35 = arith.constant 1536 : index
    %c0_36 = arith.constant 0 : index
    %55 = vector.load %arg4[%c1536_35, %c0_36] : memref<1600x128xbf16, #tpu.memory_space<vmem>>, vector<64x128xbf16>
    %cst_37 = arith.constant dense<0.000000e+00> : vector<32x128xf32>
    %56 = tpu.matmul %54, %55, %cst_37 {dimension_numbers = #tpu.dot_dimension_numbers<[1], [0], [0], [1], [0, 0, 1, 1], [], []>} : vector<32x64xbf16>, vector<64x128xbf16>, vector<32x128xf32> -> vector<32x128xf32>
    %57 = arith.addf %43, %56 : vector<32x128xf32>
    %c0_38 = arith.constant 0 : index
    %c0_39 = arith.constant 0 : index
    %58 = vector.load %arg5[%c0_38, %c0_39] : memref<1x128xf32, #tpu.memory_space<vmem>>, vector<1x128xf32>
    %59 = vector.broadcast %58 : vector<1x128xf32> to vector<32x128xf32>
    %60 = arith.addf %57, %59 : vector<32x128xf32>
    %c0_40 = arith.constant 0 : index
    %c0_41 = arith.constant 0 : index
    %61 = vector.load %arg6[%c0_40, %c0_41] : memref<32x128xf32, #tpu.memory_space<vmem>>, vector<32x128xf32>
    tpu.vector_store %arg6[%c0_40, %c0_41], %60 {strides = array<i32>} : memref<32x128xf32, #tpu.memory_space<vmem>>, vector<32x128xf32>,
    return
  }
  func.func @transform_0(%arg0: i32) -> (i32, i32) {
    %c0_i32 = arith.constant 0 : i32
    %c0_i32_0 = arith.constant 0 : i32
    return %arg0, %c0_i32 : i32, i32
  }
  func.func @transform_1(%arg0: i32) -> (i32, i32) {
    %c0_i32 = arith.constant 0 : i32
    %c0_i32_0 = arith.constant 0 : i32
    %c0_i32_1 = arith.constant 0 : i32
    return %c0_i32, %c0_i32_0 : i32, i32
  }
  func.func @transform_2(%arg0: i32) -> (i32, i32) {
    %c0_i32 = arith.constant 0 : i32
    %c0_i32_0 = arith.constant 0 : i32
    %c0_i32_1 = arith.constant 0 : i32
    return %c0_i32, %c0_i32_0 : i32, i32
  }
  func.func @transform_3(%arg0: i32) -> (i32, i32) {
    %c0_i32 = arith.constant 0 : i32
    %c0_i32_0 = arith.constant 0 : i32
    %c0_i32_1 = arith.constant 0 : i32
    return %c0_i32, %c0_i32_0 : i32, i32
  }
  func.func @transform_4(%arg0: i32) -> (i32, i32) {
    %c0_i32 = arith.constant 0 : i32
    %c0_i32_0 = arith.constant 0 : i32
    %c0_i32_1 = arith.constant 0 : i32
    return %c0_i32, %c0_i32_0 : i32, i32
  }
  func.func @transform_5(%arg0: i32) -> (i32, i32) {
    %c0_i32 = arith.constant 0 : i32
    %c0_i32_0 = arith.constant 0 : i32
    return %arg0, %c0_i32 : i32, i32
  }
}

</mosaic_0001>

<llo_original>
// kernel: tpu_custom_call.1
$region0: #{tpu_custom_call.1}
  #allocation0 [shape = 'u32[]', space=smem, size = 0x4, offset = 0x4, fixed_abs, tag = 'smem constant byte address 0x4 - core index']
  #allocation1 [shape = 'u32[144,128]{1,0:T(1,128)}', space=vmem, size = 0x12000, scoped, tag = 'internal scratch']
  %s0 = inlined_call_operand.vmem [shape: f32[32,6], index: 0, kind: input, shape index: {}]
  %s1 = inlined_call_operand.hbm [shape: f32[6,1600], index: 1, kind: input, shape index: {}]
  %s2 = inlined_call_operand.vmem [shape: f32[1,1600], index: 2, kind: input, shape index: {}]
  %s3 = inlined_call_operand.hbm [shape: bf16[1600,128], index: 3, kind: input, shape index: {}]
  %s4 = inlined_call_operand.vmem [shape: f32[1,128], index: 4, kind: input, shape index: {}]
  %s5 = inlined_call_operand.hbm [shape: f32[32,128], index: 5, kind: output, shape index: {}]
  %s6 = sld [smem:[#allocation0]]
  $region38: #{tpu_custom_call.1} parent=0
    _
  %s8 = ssub.s32 1, %s6
  %s9 = scalar_select 0, %s8, %s6
  $region1: #{tpu_custom_call.1} parent=0
    #allocation2 [shape = 'u8[53248]{0}', space=vmem, size = 0xd000, scoped, tag = 'input window, operand 1, single buffered']
    #allocation3 [shape = 's32[1]{0}', space=sflag, size = 0x4, scoped, tag = 'scoped memory for tpu_custom_call.1']
    #allocation4 [shape = 's32[1]{0}', space=sflag, size = 0x4, scoped, tag = 'scoped memory for tpu_custom_call.1']
    #allocation5 [shape = 'u8[409600]{0}', space=vmem, size = 0x64000, scoped, tag = 'input window, operand 3, single buffered']
    #allocation6 [shape = 's32[1]{0}', space=sflag, size = 0x4, scoped, tag = 'scoped memory for tpu_custom_call.1']
    #allocation7 [shape = 'u8[16384]{0}', space=vmem, size = 0x4000, scoped, tag = 'output window, operand 0, single buffered']
    %10 = vsyncpa [#allocation3], 0
    %11 = vsyncpa [#allocation6], 0
    %12 = vsyncpa [#allocation4], 0
    // Predicated region
    $region2: #{tpu_custom_call.1} parent=1 // pred_check
      _
    $region3: #{tpu_custom_call.1} parent=1 // pred_check_branch
      %14 = sbr.rel (0) target = $region5
    $region4: #{tpu_custom_call.1} parent=1 // pred_region
      _
    $region5: #{tpu_custom_call.1} parent=1 // pred_fallthru
      _
    // Predicated region
    $region6: #{tpu_custom_call.1} parent=1 // pred_check
      _
    $region7: #{tpu_custom_call.1} parent=1 // pred_check_branch
      %16 = sbr.rel (0) target = $region9
    $region8: #{tpu_custom_call.1} parent=1 // pred_region
      %s18 = ssub.s32 1664, 1664
      %19 = vsyncadd [#allocation3], %s18
      %s21 = sshll.u32 [#allocation2], 4
      %s22 = int_to_ptr.vmem [resolvable:$true] %s21
      %24 = dma.hbm_to_vmem [thread:$0]  %s1, 1664, %s22, [#allocation3]
    $region9: #{tpu_custom_call.1} parent=1 // pred_fallthru
      _
    // Predicated region
    $region10: #{tpu_custom_call.1} parent=1 // pred_check
      _
    $region11: #{tpu_custom_call.1} parent=1 // pred_check_branch
      %26 = sbr.rel (0) target = $region13
    $region12: #{tpu_custom_call.1} parent=1 // pred_region
      _
    $region13: #{tpu_custom_call.1} parent=1 // pred_fallthru
      _
    // Predicated region
    $region14: #{tpu_custom_call.1} parent=1 // pred_check
      _
    $region15: #{tpu_custom_call.1} parent=1 // pred_check_branch
      %28 = sbr.rel (0) target = $region17
    $region16: #{tpu_custom_call.1} parent=1 // pred_region
      %s30 = ssub.s32 12800, 12800
      %31 = vsyncadd [#allocation6], %s30
      %s32 = sshll.u32 [#allocation5], 4
      %s33 = int_to_ptr.vmem [resolvable:$true] %s32
      %38 = dma.hbm_to_vmem [thread:$0]  %s3, 12800, %s33, [#allocation6], 64, 64, 4
    $region17: #{tpu_custom_call.1} parent=1 // pred_fallthru
      _
    // Predicated region
    $region18: #{tpu_custom_call.1} parent=1 // pred_check
      _
    $region19: #{tpu_custom_call.1} parent=1 // pred_check_branch
      %40 = sbr.rel (0) target = $region21
    $region20: #{tpu_custom_call.1} parent=1 // pred_region
      _
    $region21: #{tpu_custom_call.1} parent=1 // pred_fallthru
      _
    // Predicated region
    $region22: #{tpu_custom_call.1} parent=1 // pred_check
      _
    $region23: #{tpu_custom_call.1} parent=1 // pred_check_branch
      %42 = sbr.rel (0) target = $region25
    $region24: #{tpu_custom_call.1} parent=1 // pred_region
      %43 = dma.done [#allocation3], 1664
    $region25: #{tpu_custom_call.1} parent=1 // pred_fallthru
      _
    // Predicated region
    $region26: #{tpu_custom_call.1} parent=1 // pred_check
      _
    $region27: #{tpu_custom_call.1} parent=1 // pred_check_branch
      %45 = sbr.rel (0) target = $region29
    $region28: #{tpu_custom_call.1} parent=1 // pred_region
      %46 = dma.done [#allocation6], 12800
    $region29: #{tpu_custom_call.1} parent=1 // pred_fallthru
      _
    %v48 = vld [vmem:[%s0] sm:$0xff]
    %v49 = vld [vmem:[%s0 + $0x8] sm:$0xff]
    %v50 = vld [vmem:[%s0 + $0x10] sm:$0xff]
    %v51 = vld [vmem:[%s0 + $0x18] sm:$0xff]
    %v52 = vld [vmem:[#allocation2] sm:$0x3f]
    %v53 = vld [vmem:[#allocation2 + $0x8] sm:$0x3f]
    %v54 = vld [vmem:[#allocation2 + $0x10] sm:$0x3f]
    %v55 = vld [vmem:[#allocation2 + $0x18] sm:$0x3f]
    %v56 = vld [vmem:[%s2] sm:$0xf]
    %v58 = vlaneseq
    %v59 = vshrl.u32 %v58, 7
    %v60 = vsub.s32 0, %v59
    %v61 = vrot.slane %v56, %v60
    %v62 = vlaneseq
    %v63 = vshrl.u32 %v62, 7
    %v64 = vsub.s32 1, %v63
    %v65 = vrot.slane %v56, %v64
    %v66 = vlaneseq
    %v67 = vshrl.u32 %v66, 7
    %v68 = vsub.s32 2, %v67
    %v69 = vrot.slane %v56, %v68
    %v70 = vlaneseq
    %v71 = vshrl.u32 %v70, 7
    %v72 = vsub.s32 3, %v71
    %v73 = vrot.slane %v56, %v72
    %vm78 = vcmask 48128
    %v80 = vsel %vm78, %v48, 0
    %v83 = vsel %vm78, %v49, 0
    %v86 = vsel %vm78, %v50, 0
    %v89 = vsel %vm78, %v51, 0
    %vm91 = vcmask 1045504
    %v93 = vsel %vm91, %v52, 0
    %v96 = vsel %vm91, %v53, 0
    %v99 = vsel %vm91, %v54, 0
    %v102 = vsel %vm91, %v55, 0
    %104 = vmatprep.subr.mxu0 0.0
    %105 = vmatpush1.msra.mxu0 0.0
    %106 = vmatprep.subr.mxu0 0.0
    %107 = vmatpush1.msra.mxu0 0.0
    %108 = vmatprep.subr.mxu0 0.0
    %109 = vmatpush1.msra.mxu0 0.0
    %110 = vmatprep.subr.mxu0 0.0
    %111 = vmatpush1.msra.mxu0 0.0
    %112 = vmatprep.subr.mxu0 0.0
    %113 = vmatpush1.msra.mxu0 0.0
    %114 = vmatprep.subr.mxu0 0.0
    %115 = vmatpush1.msra.mxu0 0.0
    %116 = vmatprep.subr.mxu0 0.0
    %117 = vmatpush1.msra.mxu0 0.0
    %118 = vmatprep.subr.mxu0 0.0
    %119 = vmatpush1.msra.mxu0 0.0
    %120 = vmatprep.subr.mxu0 0.0
    %121 = vmatpush1.msra.mxu0 0.0
    %122 = vmatprep.subr.mxu0 0.0
    %123 = vmatpush1.msra.mxu0 0.0
    %124 = vmatprep.subr.mxu0 0.0
    %125 = vmatpush1.msra.mxu0 0.0
    %126 = vmatprep.subr.mxu0 0.0
    %127 = vmatpush1.msra.mxu0 0.0
    %128 = vmatprep.subr.mxu0 0.0
    %129 = vmatpush1.msra.mxu0 0.0
    %130 = vmatprep.subr.mxu0 0.0
    %131 = vmatpush1.msra.mxu0 0.0
    %132 = vmatprep.subr.mxu0 0.0
    %133 = vmatpush1.msra.mxu0 0.0
    %134 = vmatprep.subr.mxu0 %v96
    %135 = vmatpush1.msra.mxu0 %v93
    %136 = vmatprep.subr.mxu0 0.0
    %137 = vmatpush2.msra.mxu0 0.0
    %138 = vmatprep.subr.mxu0 0.0
    %139 = vmatpush2.msra.mxu0 0.0
    %140 = vmatprep.subr.mxu0 0.0
    %141 = vmatpush2.msra.mxu0 0.0
    %142 = vmatprep.subr.mxu0 0.0
    %143 = vmatpush2.msra.mxu0 0.0
    %144 = vmatprep.subr.mxu0 0.0
    %145 = vmatpush2.msra.mxu0 0.0
    %146 = vmatprep.subr.mxu0 0.0
    %147 = vmatpush2.msra.mxu0 0.0
    %148 = vmatprep.subr.mxu0 0.0
    %149 = vmatpush2.msra.mxu0 0.0
    %150 = vmatprep.subr.mxu0 0.0
    %151 = vmatpush2.msra.mxu0 0.0
    %152 = vmatprep.subr.mxu0 0.0
    %153 = vmatpush2.msra.mxu0 0.0
    %154 = vmatprep.subr.mxu0 0.0
    %155 = vmatpush2.msra.mxu0 0.0
    %156 = vmatprep.subr.mxu0 0.0
    %157 = vmatpush2.msra.mxu0 0.0
    %158 = vmatprep.subr.mxu0 0.0
    %159 = vmatpush2.msra.mxu0 0.0
    %160 = vmatprep.subr.mxu0 0.0
    %161 = vmatpush2.msra.mxu0 0.0
    %162 = vmatprep.subr.mxu0 0.0
    %163 = vmatpush2.msra.mxu0 0.0
    %164 = vmatprep.subr.mxu0 0.0
    %165 = vmatpush2.msra.mxu0 0.0
    %166 = vmatprep.subr.mxu0 0.0
    %167 = vmatpush2.msra.mxu0 0.0
    %168 = vmatprep.mubr.f32.mxu0 0.0
    %169 = vmatmul.mubr.f32.gmra.mxu0 %v80
    %v170 = vpop.f32.mrf.mxu0
    %v171 = vadd.f32 %v61, %v170
    %v172 = vpop.f32.mrf.mxu0
    %v173 = vadd.f32 %v65, %v172
    %174 = vmatprep.mubr.f32.mxu0 0.0
    %175 = vmatmul.mubr.f32.gmra.mxu0 %v83
    %v176 = vpop.f32.mrf.mxu0
    %v177 = vadd.f32 %v61, %v176
    %v178 = vpop.f32.mrf.mxu0
    %v179 = vadd.f32 %v65, %v178
    %180 = vmatprep.mubr.f32.mxu0 0.0
    %181 = vmatmul.mubr.f32.gmra.mxu0 %v86
    %v182 = vpop.f32.mrf.mxu0
    %v183 = vadd.f32 %v61, %v182
    %v184 = vpop.f32.mrf.mxu0
    %v185 = vadd.f32 %v65, %v184
    %186 = vmatprep.mubr.f32.mxu0 0.0
    %187 = vmatmul.mubr.f32.gmra.mxu0 %v89
    %v188 = vpop.f32.mrf.mxu0
    %v189 = vadd.f32 %v61, %v188
    %v190 = vpop.f32.mrf.mxu0
    %v191 = vadd.f32 %v65, %v190
    %192 = vdwg.mxu0
    %193 = vmatprep.subr.mxu0 0.0
    %194 = vmatpush1.msra.mxu0 0.0
    %195 = vmatprep.subr.mxu0 0.0
    %196 = vmatpush1.msra.mxu0 0.0
    %197 = vmatprep.subr.mxu0 0.0
    %198 = vmatpush1.msra.mxu0 0.0
    %199 = vmatprep.subr.mxu0 0.0
    %200 = vmatpush1.msra.mxu0 0.0
    %201 = vmatprep.subr.mxu0 0.0
    %202 = vmatpush1.msra.mxu0 0.0
    %203 = vmatprep.subr.mxu0 0.0
    %204 = vmatpush1.msra.mxu0 0.0
    %205 = vmatprep.subr.mxu0 0.0
    %206 = vmatpush1.msra.mxu0 0.0
    %207 = vmatprep.subr.mxu0 0.0
    %208 = vmatpush1.msra.mxu0 0.0
    %209 = vmatprep.subr.mxu0 0.0
    %210 = vmatpush1.msra.mxu0 0.0
    %211 = vmatprep.subr.mxu0 0.0
    %212 = vmatpush1.msra.mxu0 0.0
    %213 = vmatprep.subr.mxu0 0.0
    %214 = vmatpush1.msra.mxu0 0.0
    %215 = vmatprep.subr.mxu0 0.0
    %216 = vmatpush1.msra.mxu0 0.0
    %217 = vmatprep.subr.mxu0 0.0
    %218 = vmatpush1.msra.mxu0 0.0
    %219 = vmatprep.subr.mxu0 0.0
    %220 = vmatpush1.msra.mxu0 0.0
    %221 = vmatprep.subr.mxu0 0.0
    %222 = vmatpush1.msra.mxu0 0.0
    %223 = vmatprep.subr.mxu0 %v102
    %224 = vmatpush1.msra.mxu0 %v99
    %225 = vmatprep.subr.mxu0 0.0
    %226 = vmatpush2.msra.mxu0 0.0
    %227 = vmatprep.subr.mxu0 0.0
    %228 = vmatpush2.msra.mxu0 0.0
    %229 = vmatprep.subr.mxu0 0.0
    %230 = vmatpush2.msra.mxu0 0.0
    %231 = vmatprep.subr.mxu0 0.0
    %232 = vmatpush2.msra.mxu0 0.0
    %233 = vmatprep.subr.mxu0 0.0
    %234 = vmatpush2.msra.mxu0 0.0
    %235 = vmatprep.subr.mxu0 0.0
    %236 = vmatpush2.msra.mxu0 0.0
    %237 = vmatprep.subr.mxu0 0.0
    %238 = vmatpush2.msra.mxu0 0.0
    %239 = vmatprep.subr.mxu0 0.0
    %240 = vmatpush2.msra.mxu0 0.0
    %241 = vmatprep.subr.mxu0 0.0
    %242 = vmatpush2.msra.mxu0 0.0
    %243 = vmatprep.subr.mxu0 0.0
    %244 = vmatpush2.msra.mxu0 0.0
    %245 = vmatprep.subr.mxu0 0.0
    %246 = vmatpush2.msra.mxu0 0.0
    %247 = vmatprep.subr.mxu0 0.0
    %248 = vmatpush2.msra.mxu0 0.0
    %249 = vmatprep.subr.mxu0 0.0
    %250 = vmatpush2.msra.mxu0 0.0
    %251 = vmatprep.subr.mxu0 0.0
    %252 = vmatpush2.msra.mxu0 0.0
    %253 = vmatprep.subr.mxu0 0.0
    %254 = vmatpush2.msra.mxu0 0.0
    %255 = vmatprep.subr.mxu0 0.0
    %256 = vmatpush2.msra.mxu0 0.0
    %257 = vmatprep.mubr.f32.mxu0 0.0
    %258 = vmatmul.mubr.f32.gmra.mxu0 %v80
    %v259 = vpop.f32.mrf.mxu0
    %v260 = vadd.f32 %v69, %v259
    %v261 = vpop.f32.mrf.mxu0
    %v262 = vadd.f32 %v73, %v261
    %263 = vmatprep.mubr.f32.mxu0 0.0
    %264 = vmatmul.mubr.f32.gmra.mxu0 %v83
    %v265 = vpop.f32.mrf.mxu0
    %v266 = vadd.f32 %v69, %v265
    %v267 = vpop.f32.mrf.mxu0
    %v268 = vadd.f32 %v73, %v267
    %269 = vmatprep.mubr.f32.mxu0 0.0
    %270 = vmatmul.mubr.f32.gmra.mxu0 %v86
    %v271 = vpop.f32.mrf.mxu0
    %v272 = vadd.f32 %v69, %v271
    %v273 = vpop.f32.mrf.mxu0
    %v274 = vadd.f32 %v73, %v273
    %275 = vmatprep.mubr.f32.mxu0 0.0
    %276 = vmatmul.mubr.f32.gmra.mxu0 %v89
    %v277 = vpop.f32.mrf.mxu0
    %v278 = vadd.f32 %v69, %v277
    %v279 = vpop.f32.mrf.mxu0
    %v280 = vadd.f32 %v73, %v279
    %281 = vdwg.mxu0
    %vm282 = vcmp.ge.f32.partialorder %v171, 0.0
    %vm283 = vcmp.ge.f32.partialorder %v173, 0.0
    %vm284 = vcmp.ge.f32.partialorder %v260, 0.0
    %vm285 = vcmp.ge.f32.partialorder %v262, 0.0
    %vm286 = vcmp.ge.f32.partialorder %v177, 0.0
    %vm287 = vcmp.ge.f32.partialorder %v179, 0.0
    %vm288 = vcmp.ge.f32.partialorder %v266, 0.0
    %vm289 = vcmp.ge.f32.partialorder %v268, 0.0
    %vm290 = vcmp.ge.f32.partialorder %v183, 0.0
    %vm291 = vcmp.ge.f32.partialorder %v185, 0.0
    %vm292 = vcmp.ge.f32.partialorder %v272, 0.0
    %vm293 = vcmp.ge.f32.partialorder %v274, 0.0
    %vm294 = vcmp.ge.f32.partialorder %v189, 0.0
    %vm295 = vcmp.ge.f32.partialorder %v191, 0.0
    %vm296 = vcmp.ge.f32.partialorder %v278, 0.0
    %vm297 = vcmp.ge.f32.partialorder %v280, 0.0
    %v298 = vmul.f32 %v171, 0.01
    %v299 = vmul.f32 %v173, 0.01
    %v300 = vmul.f32 %v260, 0.01
    %v301 = vmul.f32 %v262, 0.01
    %v302 = vmul.f32 %v177, 0.01
    %v303 = vmul.f32 %v179, 0.01
    %v304 = vmul.f32 %v266, 0.01
    %v305 = vmul.f32 %v268, 0.01
    %v306 = vmul.f32 %v183, 0.01
    %v307 = vmul.f32 %v185, 0.01
    %v308 = vmul.f32 %v272, 0.01
    %v309 = vmul.f32 %v274, 0.01
    %v310 = vmul.f32 %v189, 0.01
    %v311 = vmul.f32 %v191, 0.01
    %v312 = vmul.f32 %v278, 0.01
    %v313 = vmul.f32 %v280, 0.01
    %v314 = vsel %vm282, %v171, %v298
    %v315 = vsel %vm283, %v173, %v299
    %v316 = vsel %vm284, %v260, %v300
    %v317 = vsel %vm285, %v262, %v301
    %v318 = vsel %vm286, %v177, %v302
    %v319 = vsel %vm287, %v179, %v303
    %v320 = vsel %vm288, %v266, %v304
    %v321 = vsel %vm289, %v268, %v305
    %v322 = vsel %vm290, %v183, %v306
    %v323 = vsel %vm291, %v185, %v307
    %v324 = vsel %vm292, %v272, %v308
    %v325 = vsel %vm293, %v274, %v309
    %v326 = vsel %vm294, %v189, %v310
    %v327 = vsel %vm295, %v191, %v311
    %v328 = vsel %vm296, %v278, %v312
    %v329 = vsel %vm297, %v280, %v313
    %v330 = vpack.c.bf16 %v318, %v314
    %v331 = vpack.c.bf16 %v319, %v315
    %v332 = vpack.c.bf16 %v320, %v316
    %v333 = vpack.c.bf16 %v321, %v317
    %v334 = vpack.c.bf16 %v326, %v322
    %v335 = vpack.c.bf16 %v327, %v323
    %v336 = vpack.c.bf16 %v328, %v324
    %v337 = vpack.c.bf16 %v329, %v325
    %v338 = vld [vmem:[#allocation5] sm:$0xf]
    %v339 = vld [vmem:[#allocation5 + $0x4] sm:$0xf]
    %v340 = vld [vmem:[#allocation5 + $0x8] sm:$0xf]
    %v341 = vld [vmem:[#allocation5 + $0xc] sm:$0xf]
    %v342 = vld [vmem:[#allocation5 + $0x10] sm:$0xf]
    %v343 = vld [vmem:[#allocation5 + $0x14] sm:$0xf]
    %v344 = vld [vmem:[#allocation5 + $0x18] sm:$0xf]
    %v345 = vld [vmem:[#allocation5 + $0x1c] sm:$0xf]
    %v346 = vld [vmem:[#allocation5 + $0x20] sm:$0xf]
    %v347 = vld [vmem:[#allocation5 + $0x24] sm:$0xf]
    %v348 = vld [vmem:[#allocation5 + $0x28] sm:$0xf]
    %v349 = vld [vmem:[#allocation5 + $0x2c] sm:$0xf]
    %v350 = vld [vmem:[#allocation5 + $0x30] sm:$0xf]
    %v351 = vld [vmem:[#allocation5 + $0x34] sm:$0xf]
    %v352 = vld [vmem:[#allocation5 + $0x38] sm:$0xf]
    %v353 = vld [vmem:[#allocation5 + $0x3c] sm:$0xf]
    %v354 = vld [vmem:[#allocation5 + $0x40] sm:$0xf]
    %v355 = vld [vmem:[#allocation5 + $0x44] sm:$0xf]
    %v356 = vld [vmem:[#allocation5 + $0x48] sm:$0xf]
    %v357 = vld [vmem:[#allocation5 + $0x4c] sm:$0xf]
    %v358 = vld [vmem:[#allocation5 + $0x50] sm:$0xf]
    %v359 = vld [vmem:[#allocation5 + $0x54] sm:$0xf]
    %v360 = vld [vmem:[#allocation5 + $0x58] sm:$0xf]
    %v361 = vld [vmem:[#allocation5 + $0x5c] sm:$0xf]
    %v362 = vld [vmem:[#allocation5 + $0x60] sm:$0xf]
    %v363 = vld [vmem:[#allocation5 + $0x64] sm:$0xf]
    %v364 = vld [vmem:[#allocation5 + $0x68] sm:$0xf]
    %v365 = vld [vmem:[#allocation5 + $0x6c] sm:$0xf]
    %v366 = vld [vmem:[#allocation5 + $0x70] sm:$0xf]
    %v367 = vld [vmem:[#allocation5 + $0x74] sm:$0xf]
    %v368 = vld [vmem:[#allocation5 + $0x78] sm:$0xf]
    %v369 = vld [vmem:[#allocation5 + $0x7c] sm:$0xf]
    %v370 = vld [vmem:[#allocation5 + $0x80] sm:$0xf]
    %v371 = vld [vmem:[#allocation5 + $0x84] sm:$0xf]
    %v372 = vld [vmem:[#allocation5 + $0x88] sm:$0xf]
    %v373 = vld [vmem:[#allocation5 + $0x8c] sm:$0xf]
    %v374 = vld [vmem:[#allocation5 + $0x90] sm:$0xf]
    %v375 = vld [vmem:[#allocation5 + $0x94] sm:$0xf]
    %v376 = vld [vmem:[#allocation5 + $0x98] sm:$0xf]
    %v377 = vld [vmem:[#allocation5 + $0x9c] sm:$0xf]
    %v378 = vld [vmem:[#allocation5 + $0xa0] sm:$0xf]
    %v379 = vld [vmem:[#allocation5 + $0xa4] sm:$0xf]
    %v380 = vld [vmem:[#allocation5 + $0xa8] sm:$0xf]
    %v381 = vld [vmem:[#allocation5 + $0xac] sm:$0xf]
    %v382 = vld [vmem:[#allocation5 + $0xb0] sm:$0xf]
    %v383 = vld [vmem:[#allocation5 + $0xb4] sm:$0xf]
    %v384 = vld [vmem:[#allocation5 + $0xb8] sm:$0xf]
    %v385 = vld [vmem:[#allocation5 + $0xbc] sm:$0xf]
    %v386 = vld [vmem:[#allocation5 + $0xc0] sm:$0xf]
    %v387 = vld [vmem:[#allocation5 + $0xc4] sm:$0xf]
    %v388 = vld [vmem:[#allocation5 + $0xc8] sm:$0xf]
    %v389 = vld [vmem:[#allocation5 + $0xcc] sm:$0xf]
    %v390 = vld [vmem:[#allocation5 + $0xd0] sm:$0xf]
    %v391 = vld [vmem:[#allocation5 + $0xd4] sm:$0xf]
    %v392 = vld [vmem:[#allocation5 + $0xd8] sm:$0xf]
    %v393 = vld [vmem:[#allocation5 + $0xdc] sm:$0xf]
    %v394 = vld [vmem:[#allocation5 + $0xe0] sm:$0xf]
    %v395 = vld [vmem:[#allocation5 + $0xe4] sm:$0xf]
    %v396 = vld [vmem:[#allocation5 + $0xe8] sm:$0xf]
    %v397 = vld [vmem:[#allocation5 + $0xec] sm:$0xf]
    %v398 = vld [vmem:[#allocation5 + $0xf0] sm:$0xf]
    %v399 = vld [vmem:[#allocation5 + $0xf4] sm:$0xf]
    %v400 = vld [vmem:[#allocation5 + $0xf8] sm:$0xf]
    %v401 = vld [vmem:[#allocation5 + $0xfc] sm:$0xf]
    %v402 = vld [vmem:[#allocation2 + $0x20] sm:$0x3f]
    %v403 = vld [vmem:[#allocation2 + $0x28] sm:$0x3f]
    %v404 = vld [vmem:[#allocation2 + $0x30] sm:$0x3f]
    %v405 = vld [vmem:[#allocation2 + $0x38] sm:$0x3f]
    %v406 = vld [vmem:[%s2 + $0x4] sm:$0xf]
    %v408 = vlaneseq
    %v409 = vshrl.u32 %v408, 7
    %v410 = vsub.s32 0, %v409
    %v411 = vrot.slane %v406, %v410
    %v412 = vlaneseq
    %v413 = vshrl.u32 %v412, 7
    %v414 = vsub.s32 1, %v413
    %v415 = vrot.slane %v406, %v414
    %v416 = vlaneseq
    %v417 = vshrl.u32 %v416, 7
    %v418 = vsub.s32 2, %v417
    %v419 = vrot.slane %v406, %v418
    %v420 = vlaneseq
    %v421 = vshrl.u32 %v420, 7
    %v422 = vsub.s32 3, %v421
    %v423 = vrot.slane %v406, %v422
    %v429 = vsel %vm91, %v402, 0
    %v432 = vsel %vm91, %v403, 0
    %v435 = vsel %vm91, %v404, 0
    %v438 = vsel %vm91, %v405, 0
    %440 = vmatprep.subr.mxu0 0.0
    %441 = vmatpush1.msra.mxu0 0.0
    %442 = vmatprep.subr.mxu0 0.0
    %443 = vmatpush1.msra.mxu0 0.0
    %444 = vmatprep.subr.mxu0 0.0
    %445 = vmatpush1.msra.mxu0 0.0
    %446 = vmatprep.subr.mxu0 0.0
    %447 = vmatpush1.msra.mxu0 0.0
    %448 = vmatprep.subr.mxu0 0.0
    %449 = vmatpush1.msra.mxu0 0.0
    %450 = vmatprep.subr.mxu0 0.0
    %451 = vmatpush1.msra.mxu0 0.0
    %452 = vmatprep.subr.mxu0 0.0
    %453 = vmatpush1.msra.mxu0 0.0
    %454 = vmatprep.subr.mxu0 0.0
    %455 = vmatpush1.msra.mxu0 0.0
    %456 = vmatprep.subr.mxu0 0.0
    %457 = vmatpush1.msra.mxu0 0.0
    %458 = vmatprep.subr.mxu0 0.0
    %459 = vmatpush1.msra.mxu0 0.0
    %460 = vmatprep.subr.mxu0 0.0
    %461 = vmatpush1.msra.mxu0 0.0
    %462 = vmatprep.subr.mxu0 0.0
    %463 = vmatpush1.msra.mxu0 0.0
    %464 = vmatprep.subr.mxu0 0.0
    %465 = vmatpush1.msra.mxu0 0.0
    %466 = vmatprep.subr.mxu0 0.0
    %467 = vmatpush1.msra.mxu0 0.0
    %468 = vmatprep.subr.mxu0 0.0
    %469 = vmatpush1.msra.mxu0 0.0
    %470 = vmatprep.subr.mxu0 %v432
    %471 = vmatpush1.msra.mxu0 %v429
    %472 = vmatprep.subr.mxu0 0.0
    %473 = vmatpush2.msra.mxu0 0.0
    %474 = vmatprep.subr.mxu0 0.0
    %475 = vmatpush2.msra.mxu0 0.0
    %476 = vmatprep.subr.mxu0 0.0
    %477 = vmatpush2.msra.mxu0 0.0
    %478 = vmatprep.subr.mxu0 0.0
    %479 = vmatpush2.msra.mxu0 0.0
    %480 = vmatprep.subr.mxu0 0.0
    %481 = vmatpush2.msra.mxu0 0.0
    %482 = vmatprep.subr.mxu0 0.0
    %483 = vmatpush2.msra.mxu0 0.0
    %484 = vmatprep.subr.mxu0 0.0
    %485 = vmatpush2.msra.mxu0 0.0
    %486 = vmatprep.subr.mxu0 0.0
    %487 = vmatpush2.msra.mxu0 0.0
    %488 = vmatprep.subr.mxu0 0.0
    %489 = vmatpush2.msra.mxu0 0.0
    %490 = vmatprep.subr.mxu0 0.0
    %491 = vmatpush2.msra.mxu0 0.0
    %492 = vmatprep.subr.mxu0 0.0
    %493 = vmatpush2.msra.mxu0 0.0
    %494 = vmatprep.subr.mxu0 0.0
    %495 = vmatpush2.msra.mxu0 0.0
    %496 = vmatprep.subr.mxu0 0.0
    %497 = vmatpush2.msra.mxu0 0.0
    %498 = vmatprep.subr.mxu0 0.0
    %499 = vmatpush2.msra.mxu0 0.0
    %500 = vmatprep.subr.mxu0 0.0
    %501 = vmatpush2.msra.mxu0 0.0
    %502 = vmatprep.subr.mxu0 0.0
    %503 = vmatpush2.msra.mxu0 0.0
    %504 = vmatprep.mubr.f32.mxu0 0.0
    %505 = vmatmul.mubr.f32.gmra.mxu0 %v80
    %v506 = vpop.f32.mrf.mxu0
    %v507 = vadd.f32 %v411, %v506
    %v508 = vpop.f32.mrf.mxu0
    %v509 = vadd.f32 %v415, %v508
    %510 = vmatprep.mubr.f32.mxu0 0.0
    %511 = vmatmul.mubr.f32.gmra.mxu0 %v83
    %v512 = vpop.f32.mrf.mxu0
    %v513 = vadd.f32 %v411, %v512
    %v514 = vpop.f32.mrf.mxu0
    %v515 = vadd.f32 %v415, %v514
    %516 = vmatprep.mubr.f32.mxu0 0.0
    %517 = vmatmul.mubr.f32.gmra.mxu0 %v86
    %v518 = vpop.f32.mrf.mxu0
    %v519 = vadd.f32 %v411, %v518
    %v520 = vpop.f32.mrf.mxu0
    %v521 = vadd.f32 %v415, %v520
    %522 = vmatprep.mubr.f32.mxu0 0.0
    %523 = vmatmul.mubr.f32.gmra.mxu0 %v89
    %v524 = vpop.f32.mrf.mxu0
    %v525 = vadd.f32 %v411, %v524
    %v526 = vpop.f32.mrf.mxu0
    %v527 = vadd.f32 %v415, %v526
    %528 = vdwg.mxu0
    %529 = vmatprep.subr.mxu0 0.0
    %530 = vmatpush1.msra.mxu0 0.0
    %531 = vmatprep.subr.mxu0 0.0
    %532 = vmatpush1.msra.mxu0 0.0
    %533 = vmatprep.subr.mxu0 0.0
    %534 = vmatpush1.msra.mxu0 0.0
    %535 = vmatprep.subr.mxu0 0.0
    %536 = vmatpush1.msra.mxu0 0.0
    %537 = vmatprep.subr.mxu0 0.0
    %538 = vmatpush1.msra.mxu0 0.0
    %539 = vmatprep.subr.mxu0 0.0
    %540 = vmatpush1.msra.mxu0 0.0
    %541 = vmatprep.subr.mxu0 0.0
    %542 = vmatpush1.msra.mxu0 0.0
    %543 = vmatprep.subr.mxu0 0.0
    %544 = vmatpush1.msra.mxu0 0.0
    %545 = vmatprep.subr.mxu0 0.0
    %546 = vmatpush1.msra.mxu0 0.0
    %547 = vmatprep.subr.mxu0 0.0
    %548 = vmatpush1.msra.mxu0 0.0
    %549 = vmatprep.subr.mxu0 0.0
    %550 = vmatpush1.msra.mxu0 0.0
    %551 = vmatprep.subr.mxu0 0.0
    %552 = vmatpush1.msra.mxu0 0.0
    %553 = vmatprep.subr.mxu0 0.0
    %554 = vmatpush1.msra.mxu0 0.0
    %555 = vmatprep.subr.mxu0 0.0
    %556 = vmatpush1.msra.mxu0 0.0
    %557 = vmatprep.subr.mxu0 0.0
    %558 = vmatpush1.msra.mxu0 0.0
    %559 = vmatprep.subr.mxu0 %v438
    %560 = vmatpush1.msra.mxu0 %v435
    %561 = vmatprep.subr.mxu0 0.0
    %562 = vmatpush2.msra.mxu0 0.0
    %563 = vmatprep.subr.mxu0 0.0
    %564 = vmatpush2.msra.mxu0 0.0
    %565 = vmatprep.subr.mxu0 0.0
    %566 = vmatpush2.msra.mxu0 0.0
    %567 = vmatprep.subr.mxu0 0.0
    %568 = vmatpush2.msra.mxu0 0.0
    %569 = vmatprep.subr.mxu0 0.0
    %570 = vmatpush2.msra.mxu0 0.0
    %571 = vmatprep.subr.mxu0 0.0
    %572 = vmatpush2.msra.mxu0 0.0
    %573 = vmatprep.subr.mxu0 0.0
    %574 = vmatpush2.msra.mxu0 0.0
    %575 = vmatprep.subr.mxu0 0.0
    %576 = vmatpush2.msra.mxu0 0.0
    %577 = vmatprep.subr.mxu0 0.0
    %578 = vmatpush2.msra.mxu0 0.0
    %579 = vmatprep.subr.mxu0 0.0
    %580 = vmatpush2.msra.mxu0 0.0
    %581 = vmatprep.subr.mxu0 0.0
    %582 = vmatpush2.msra.mxu0 0.0
    %583 = vmatprep.subr.mxu0 0.0
    %584 = vmatpush2.msra.mxu0 0.0
    %585 = vmatprep.subr.mxu0 0.0
    %586 = vmatpush2.msra.mxu0 0.0
    %587 = vmatprep.subr.mxu0 0.0
    %588 = vmatpush2.msra.mxu0 0.0
    %589 = vmatprep.subr.mxu0 0.0
    %590 = vmatpush2.msra.mxu0 0.0
    %591 = vmatprep.subr.mxu0 0.0
    %592 = vmatpush2.msra.mxu0 0.0
    %593 = vmatprep.mubr.f32.mxu0 0.0
    %594 = vmatmul.mubr.f32.gmra.mxu0 %v80
    %v595 = vpop.f32.mrf.mxu0
    %v596 = vadd.f32 %v419, %v595
    %v597 = vpop.f32.mrf.mxu0
    %v598 = vadd.f32 %v423, %v597
    %599 = vmatprep.mubr.f32.mxu0 0.0
    %600 = vmatmul.mubr.f32.gmra.mxu0 %v83
    %v601 = vpop.f32.mrf.mxu0
    %v602 = vadd.f32 %v419, %v601
    %v603 = vpop.f32.mrf.mxu0
    %v604 = vadd.f32 %v423, %v603
    %605 = vmatprep.mubr.f32.mxu0 0.0
    %606 = vmatmul.mubr.f32.gmra.mxu0 %v86
    %v607 = vpop.f32.mrf.mxu0
    %v608 = vadd.f32 %v419, %v607
    %v609 = vpop.f32.mrf.mxu0
    %v610 = vadd.f32 %v423, %v609
    %611 = vmatprep.mubr.f32.mxu0 0.0
    %612 = vmatmul.mubr.f32.gmra.mxu0 %v89
    %v613 = vpop.f32.mrf.mxu0
    %v614 = vadd.f32 %v419, %v613
    %v615 = vpop.f32.mrf.mxu0
    %v616 = vadd.f32 %v423, %v615
    %617 = vdwg.mxu0
    %vm618 = vcmp.ge.f32.partialorder %v507, 0.0
    %vm619 = vcmp.ge.f32.partialorder %v509, 0.0
    %vm620 = vcmp.ge.f32.partialorder %v596, 0.0
    %vm621 = vcmp.ge.f32.partialorder %v598, 0.0
    %vm622 = vcmp.ge.f32.partialorder %v513, 0.0
    %vm623 = vcmp.ge.f32.partialorder %v515, 0.0
    %vm624 = vcmp.ge.f32.partialorder %v602, 0.0
    %vm625 = vcmp.ge.f32.partialorder %v604, 0.0
    %vm626 = vcmp.ge.f32.partialorder %v519, 0.0
    %vm627 = vcmp.ge.f32.partialorder %v521, 0.0
    %vm628 = vcmp.ge.f32.partialorder %v608, 0.0
    %vm629 = vcmp.ge.f32.partialorder %v610, 0.0
    %vm630 = vcmp.ge.f32.partialorder %v525, 0.0
    %vm631 = vcmp.ge.f32.partialorder %v527, 0.0
    %vm632 = vcmp.ge.f32.partialorder %v614, 0.0
    %vm633 = vcmp.ge.f32.partialorder %v616, 0.0
    %v634 = vmul.f32 %v507, 0.01
    %v635 = vmul.f32 %v509, 0.01
    %v636 = vmul.f32 %v596, 0.01
    %v637 = vmul.f32 %v598, 0.01
    %v638 = vmul.f32 %v513, 0.01
    %v639 = vmul.f32 %v515, 0.01
    %v640 = vmul.f32 %v602, 0.01
    %v641 = vmul.f32 %v604, 0.01
    %v642 = vmul.f32 %v519, 0.01
    %v643 = vmul.f32 %v521, 0.01
    %v644 = vmul.f32 %v608, 0.01
    %v645 = vmul.f32 %v610, 0.01
    %v646 = vmul.f32 %v525, 0.01
    %v647 = vmul.f32 %v527, 0.01
    %v648 = vmul.f32 %v614, 0.01
    %v649 = vmul.f32 %v616, 0.01
    %v650 = vsel %vm618, %v507, %v634
    %v651 = vsel %vm619, %v509, %v635
    %v652 = vsel %vm620, %v596, %v636
    %v653 = vsel %vm621, %v598, %v637
    %v654 = vsel %vm622, %v513, %v638
    %v655 = vsel %vm623, %v515, %v639
    %v656 = vsel %vm624, %v602, %v640
    %v657 = vsel %vm625, %v604, %v641
    %v658 = vsel %vm626, %v519, %v642
    %v659 = vsel %vm627, %v521, %v643
    %v660 = vsel %vm628, %v608, %v644
    %v661 = vsel %vm629, %v610, %v645
    %v662 = vsel %vm630, %v525, %v646
    %v663 = vsel %vm631, %v527, %v647
    %v664 = vsel %vm632, %v614, %v648
    %v665 = vsel %vm633, %v616, %v649
    %v666 = vpack.c.bf16 %v654, %v650
    %v667 = vpack.c.bf16 %v655, %v651
    %v668 = vpack.c.bf16 %v656, %v652
    %v669 = vpack.c.bf16 %v657, %v653
    %v670 = vpack.c.bf16 %v662, %v658
    %v671 = vpack.c.bf16 %v663, %v659
    %v672 = vpack.c.bf16 %v664, %v660
    %v673 = vpack.c.bf16 %v665, %v661
    %v674 = vld [vmem:[#allocation5 + $0x100] sm:$0xf]
    %v675 = vld [vmem:[#allocation5 + $0x104] sm:$0xf]
    %v676 = vld [vmem:[#allocation5 + $0x108] sm:$0xf]
    %v677 = vld [vmem:[#allocation5 + $0x10c] sm:$0xf]
    %v678 = vld [vmem:[#allocation5 + $0x110] sm:$0xf]
    %v679 = vld [vmem:[#allocation5 + $0x114] sm:$0xf]
    %v680 = vld [vmem:[#allocation5 + $0x118] sm:$0xf]
    %v681 = vld [vmem:[#allocation5 + $0x11c] sm:$0xf]
    %v682 = vld [vmem:[#allocation5 + $0x120] sm:$0xf]
    %v683 = vld [vmem:[#allocation5 + $0x124] sm:$0xf]
    %v684 = vld [vmem:[#allocation5 + $0x128] sm:$0xf]
    %v685 = vld [vmem:[#allocation5 + $0x12c] sm:$0xf]
    %v686 = vld [vmem:[#allocation5 + $0x130] sm:$0xf]
    %v687 = vld [vmem:[#allocation5 + $0x134] sm:$0xf]
    %v688 = vld [vmem:[#allocation5 + $0x138] sm:$0xf]
    %v689 = vld [vmem:[#allocation5 + $0x13c] sm:$0xf]
    %v690 = vld [vmem:[#allocation5 + $0x140] sm:$0xf]
    %v691 = vld [vmem:[#allocation5 + $0x144] sm:$0xf]
    %v692 = vld [vmem:[#allocation5 + $0x148] sm:$0xf]
    %v693 = vld [vmem:[#allocation5 + $0x14c] sm:$0xf]
    %v694 = vld [vmem:[#allocation5 + $0x150] sm:$0xf]
    %v695 = vld [vmem:[#allocation5 + $0x154] sm:$0xf]
    %v696 = vld [vmem:[#allocation5 + $0x158] sm:$0xf]
    %v697 = vld [vmem:[#allocation5 + $0x15c] sm:$0xf]
    %v698 = vld [vmem:[#allocation5 + $0x160] sm:$0xf]
    %v699 = vld [vmem:[#allocation5 + $0x164] sm:$0xf]
    %v700 = vld [vmem:[#allocation5 + $0x168] sm:$0xf]
    %v701 = vld [vmem:[#allocation5 + $0x16c] sm:$0xf]
    %v702 = vld [vmem:[#allocation5 + $0x170] sm:$0xf]
    %v703 = vld [vmem:[#allocation5 + $0x174] sm:$0xf]
    %v704 = vld [vmem:[#allocation5 + $0x178] sm:$0xf]
    %v705 = vld [vmem:[#allocation5 + $0x17c] sm:$0xf]
    %v706 = vld [vmem:[#allocation5 + $0x180] sm:$0xf]
    %v707 = vld [vmem:[#allocation5 + $0x184] sm:$0xf]
    %v708 = vld [vmem:[#allocation5 + $0x188] sm:$0xf]
    %v709 = vld [vmem:[#allocation5 + $0x18c] sm:$0xf]
    %v710 = vld [vmem:[#allocation5 + $0x190] sm:$0xf]
    %v711 = vld [vmem:[#allocation5 + $0x194] sm:$0xf]
    %v712 = vld [vmem:[#allocation5 + $0x198] sm:$0xf]
    %v713 = vld [vmem:[#allocation5 + $0x19c] sm:$0xf]
    %v714 = vld [vmem:[#allocation5 + $0x1a0] sm:$0xf]
    %v715 = vld [vmem:[#allocation5 + $0x1a4] sm:$0xf]
    %v716 = vld [vmem:[#allocation5 + $0x1a8] sm:$0xf]
    %v717 = vld [vmem:[#allocation5 + $0x1ac] sm:$0xf]
    %v718 = vld [vmem:[#allocation5 + $0x1b0] sm:$0xf]
    %v719 = vld [vmem:[#allocation5 + $0x1b4] sm:$0xf]
    %v720 = vld [vmem:[#allocation5 + $0x1b8] sm:$0xf]
    %v721 = vld [vmem:[#allocation5 + $0x1bc] sm:$0xf]
    %v722 = vld [vmem:[#allocation5 + $0x1c0] sm:$0xf]
    %v723 = vld [vmem:[#allocation5 + $0x1c4] sm:$0xf]
    %v724 = vld [vmem:[#allocation5 + $0x1c8] sm:$0xf]
    %v725 = vld [vmem:[#allocation5 + $0x1cc] sm:$0xf]
    %v726 = vld [vmem:[#allocation5 + $0x1d0] sm:$0xf]
    %v727 = vld [vmem:[#allocation5 + $0x1d4] sm:$0xf]
    %v728 = vld [vmem:[#allocation5 + $0x1d8] sm:$0xf]
    %v729 = vld [vmem:[#allocation5 + $0x1dc] sm:$0xf]
    %v730 = vld [vmem:[#allocation5 + $0x1e0] sm:$0xf]
    %v731 = vld [vmem:[#allocation5 + $0x1e4] sm:$0xf]
    %v732 = vld [vmem:[#allocation5 + $0x1e8] sm:$0xf]
    %v733 = vld [vmem:[#allocation5 + $0x1ec] sm:$0xf]
    %v734 = vld [vmem:[#allocation5 + $0x1f0] sm:$0xf]
    %v735 = vld [vmem:[#allocation5 + $0x1f4] sm:$0xf]
    %v736 = vld [vmem:[#allocation5 + $0x1f8] sm:$0xf]
    %v737 = vld [vmem:[#allocation5 + $0x1fc] sm:$0xf]
    %v802 = vunpack.c.l.b16 %v674
    %v803 = vunpack.c.l.b16 %v675
    %v804 = vunpack.c.l.b16 %v676
    %v805 = vunpack.c.l.b16 %v677
    %v806 = vunpack.c.l.b16 %v678
    %v807 = vunpack.c.l.b16 %v679
    %v808 = vunpack.c.l.b16 %v680
    %v809 = vunpack.c.l.b16 %v681
    %v810 = vunpack.c.l.b16 %v682
    %v811 = vunpack.c.l.b16 %v683
    %v812 = vunpack.c.l.b16 %v684
    %v813 = vunpack.c.l.b16 %v685
    %v814 = vunpack.c.l.b16 %v686
    %v815 = vunpack.c.l.b16 %v687
    %v816 = vunpack.c.l.b16 %v688
    %v817 = vunpack.c.l.b16 %v689
    %v818 = vunpack.c.l.b16 %v690
    %v819 = vunpack.c.l.b16 %v691
    %v820 = vunpack.c.l.b16 %v692
    %v821 = vunpack.c.l.b16 %v693
    %v822 = vunpack.c.l.b16 %v694
    %v823 = vunpack.c.l.b16 %v695
    %v824 = vunpack.c.l.b16 %v696
    %v825 = vunpack.c.l.b16 %v697
    %v826 = vunpack.c.l.b16 %v698
    %v827 = vunpack.c.l.b16 %v699
    %v828 = vunpack.c.l.b16 %v700
    %v829 = vunpack.c.l.b16 %v701
    %v830 = vunpack.c.l.b16 %v702
    %v831 = vunpack.c.l.b16 %v703
    %v832 = vunpack.c.l.b16 %v704
    %v833 = vunpack.c.l.b16 %v705
    %v834 = vunpack.c.l.b16 %v706
    %v835 = vunpack.c.l.b16 %v707
    %v836 = vunpack.c.l.b16 %v708
    %v837 = vunpack.c.l.b16 %v709
    %v838 = vunpack.c.l.b16 %v710
    %v839 = vunpack.c.l.b16 %v711
    %v840 = vunpack.c.l.b16 %v712
    %v841 = vunpack.c.l.b16 %v713
    %v842 = vunpack.c.l.b16 %v714
    %v843 = vunpack.c.l.b16 %v715
    %v844 = vunpack.c.l.b16 %v716
    %v845 = vunpack.c.l.b16 %v717
    %v846 = vunpack.c.l.b16 %v718
    %v847 = vunpack.c.l.b16 %v719
    %v848 = vunpack.c.l.b16 %v720
    %v849 = vunpack.c.l.b16 %v721
    %v850 = vunpack.c.l.b16 %v722
    %v851 = vunpack.c.l.b16 %v723
    %v852 = vunpack.c.l.b16 %v724
    %v853 = vunpack.c.l.b16 %v725
    %v854 = vunpack.c.l.b16 %v726
    %v855 = vunpack.c.l.b16 %v727
    %v856 = vunpack.c.l.b16 %v728
    %v857 = vunpack.c.l.b16 %v729
    %v858 = vunpack.c.l.b16 %v730
    %v859 = vunpack.c.l.b16 %v731
    %v860 = vunpack.c.l.b16 %v732
    %v861 = vunpack.c.l.b16 %v733
    %v862 = vunpack.c.l.b16 %v734
    %v863 = vunpack.c.l.b16 %v735
    %v864 = vunpack.c.l.b16 %v736
    %v865 = vunpack.c.l.b16 %v737
    %v866 = vpack.c.b16 %v803, %v802
    %v867 = vpack.c.b16 %v805, %v804
    %v868 = vpack.c.b16 %v807, %v806
    %v869 = vpack.c.b16 %v809, %v808
    %v870 = vpack.c.b16 %v811, %v810
    %v871 = vpack.c.b16 %v813, %v812
    %v872 = vpack.c.b16 %v815, %v814
    %v873 = vpack.c.b16 %v817, %v816
    %v874 = vpack.c.b16 %v819, %v818
    %v875 = vpack.c.b16 %v821, %v820
    %v876 = vpack.c.b16 %v823, %v822
    %v877 = vpack.c.b16 %v825, %v824
    %v878 = vpack.c.b16 %v827, %v826
    %v879 = vpack.c.b16 %v829, %v828
    %v880 = vpack.c.b16 %v831, %v830
    %v881 = vpack.c.b16 %v833, %v832
    %v882 = vpack.c.b16 %v835, %v834
    %v883 = vpack.c.b16 %v837, %v836
    %v884 = vpack.c.b16 %v839, %v838
    %v885 = vpack.c.b16 %v841, %v840
    %v886 = vpack.c.b16 %v843, %v842
    %v887 = vpack.c.b16 %v845, %v844
    %v888 = vpack.c.b16 %v847, %v846
    %v889 = vpack.c.b16 %v849, %v848
    %v890 = vpack.c.b16 %v851, %v850
    %v891 = vpack.c.b16 %v853, %v852
    %v892 = vpack.c.b16 %v855, %v854
    %v893 = vpack.c.b16 %v857, %v856
    %v894 = vpack.c.b16 %v859, %v858
    %v895 = vpack.c.b16 %v861, %v860
    %v896 = vpack.c.b16 %v863, %v862
    %v897 = vpack.c.b16 %v865, %v864
    %930 = vmatprep.subr.bf16.mxu0 0
    %931 = vmatpush1.bf16.msra.mxu0 %v873
    %932 = vmatprep.subr.bf16.mxu0 0
    %933 = vmatpush1.bf16.msra.mxu0 %v872
    %934 = vmatprep.subr.bf16.mxu0 0
    %935 = vmatpush1.bf16.msra.mxu0 %v871
    %936 = vmatprep.subr.bf16.mxu0 0
    %937 = vmatpush1.bf16.msra.mxu0 %v870
    %938 = vmatprep.subr.bf16.mxu0 0
    %939 = vmatpush1.bf16.msra.mxu0 %v869
    %940 = vmatprep.subr.bf16.mxu0 0
    %941 = vmatpush1.bf16.msra.mxu0 %v868
    %942 = vmatprep.subr.bf16.mxu0 0
    %943 = vmatpush1.bf16.msra.mxu0 %v867
    %944 = vmatprep.subr.bf16.mxu0 0
    %945 = vmatpush1.bf16.msra.mxu0 %v866
    %946 = vmatprep.subr.bf16.mxu0 0
    %947 = vmatpush2.bf16.msra.mxu0 %v881
    %948 = vmatprep.subr.bf16.mxu0 0
    %949 = vmatpush2.bf16.msra.mxu0 %v880
    %950 = vmatprep.subr.bf16.mxu0 0
    %951 = vmatpush2.bf16.msra.mxu0 %v879
    %952 = vmatprep.subr.bf16.mxu0 0
    %953 = vmatpush2.bf16.msra.mxu0 %v878
    %954 = vmatprep.subr.bf16.mxu0 0
    %955 = vmatpush2.bf16.msra.mxu0 %v877
    %956 = vmatprep.subr.bf16.mxu0 0
    %957 = vmatpush2.bf16.msra.mxu0 %v876
    %958 = vmatprep.subr.bf16.mxu0 0
    %959 = vmatpush2.bf16.msra.mxu0 %v875
    %960 = vmatprep.subr.bf16.mxu0 0
    %961 = vmatpush2.bf16.msra.mxu0 %v874
    %962 = vmatprep.mubr.bf16.mxu0 %v667
    %963 = vmatmul.mubr.bf16.gmra.mxu0 %v666
    %v964 = vpop.f32.mrf.mxu0
    %v965 = vadd.f32 0.0, %v964
    %v966 = vpop.f32.mrf.mxu0
    %v967 = vpop.f32.mrf.mxu0
    %v968 = vadd.f32 0.0, %v967
    %v969 = vpop.f32.mrf.mxu0
    %970 = vmatprep.mubr.bf16.mxu0 %v671
    %971 = vmatmul.mubr.bf16.gmra.mxu0 %v670
    %v972 = vpop.f32.mrf.mxu0
    %v973 = vadd.f32 0.0, %v972
    %v974 = vpop.f32.mrf.mxu0
    %v975 = vpop.f32.mrf.mxu0
    %v976 = vadd.f32 0.0, %v975
    %v977 = vpop.f32.mrf.mxu0
    %978 = vdwg.mxu0
    %979 = vmatprep.subr.bf16.mxu0 0
    %980 = vmatpush1.bf16.msra.mxu0 %v889
    %981 = vmatprep.subr.bf16.mxu0 0
    %982 = vmatpush1.bf16.msra.mxu0 %v888
    %983 = vmatprep.subr.bf16.mxu0 0
    %984 = vmatpush1.bf16.msra.mxu0 %v887
    %985 = vmatprep.subr.bf16.mxu0 0
    %986 = vmatpush1.bf16.msra.mxu0 %v886
    %987 = vmatprep.subr.bf16.mxu0 0
    %988 = vmatpush1.bf16.msra.mxu0 %v885
    %989 = vmatprep.subr.bf16.mxu0 0
    %990 = vmatpush1.bf16.msra.mxu0 %v884
    %991 = vmatprep.subr.bf16.mxu0 0
    %992 = vmatpush1.bf16.msra.mxu0 %v883
    %993 = vmatprep.subr.bf16.mxu0 0
    %994 = vmatpush1.bf16.msra.mxu0 %v882
    %995 = vmatprep.subr.bf16.mxu0 0
    %996 = vmatpush2.bf16.msra.mxu0 %v897
    %997 = vmatprep.subr.bf16.mxu0 0
    %998 = vmatpush2.bf16.msra.mxu0 %v896
    %999 = vmatprep.subr.bf16.mxu0 0
    %1000 = vmatpush2.bf16.msra.mxu0 %v895
    %1001 = vmatprep.subr.bf16.mxu0 0
    %1002 = vmatpush2.bf16.msra.mxu0 %v894
    %1003 = vmatprep.subr.bf16.mxu0 0
    %1004 = vmatpush2.bf16.msra.mxu0 %v893
    %1005 = vmatprep.subr.bf16.mxu0 0
    %1006 = vmatpush2.bf16.msra.mxu0 %v892
    %1007 = vmatprep.subr.bf16.mxu0 0
    %1008 = vmatpush2.bf16.msra.mxu0 %v891
    %1009 = vmatprep.subr.bf16.mxu0 0
    %1010 = vmatpush2.bf16.msra.mxu0 %v890
    %1011 = vmatprep.mubr.bf16.mxu0 %v669
    %1012 = vmatmul.mubr.bf16.gmra.mxu0 %v668
    %v1013 = vpop.f32.mrf.mxu0
    %v1014 = vadd.f32 %v965, %v1013
    %v1015 = vpop.f32.mrf.mxu0
    %v1016 = vpop.f32.mrf.mxu0
    %v1017 = vadd.f32 %v968, %v1016
    %v1018 = vpop.f32.mrf.mxu0
    %1019 = vmatprep.mubr.bf16.mxu0 %v673
    %1020 = vmatmul.mubr.bf16.gmra.mxu0 %v672
    %v1021 = vpop.f32.mrf.mxu0
    %v1022 = vadd.f32 %v973, %v1021
    %v1023 = vpop.f32.mrf.mxu0
    %v1024 = vpop.f32.mrf.mxu0
    %v1025 = vadd.f32 %v976, %v1024
    %v1026 = vpop.f32.mrf.mxu0
    %1027 = vdwg.mxu0
    %v1092 = vunpack.c.l.b16 %v338
    %v1093 = vunpack.c.l.b16 %v339
    %v1094 = vunpack.c.l.b16 %v340
    %v1095 = vunpack.c.l.b16 %v341
    %v1096 = vunpack.c.l.b16 %v342
    %v1097 = vunpack.c.l.b16 %v343
    %v1098 = vunpack.c.l.b16 %v344
    %v1099 = vunpack.c.l.b16 %v345
    %v1100 = vunpack.c.l.b16 %v346
    %v1101 = vunpack.c.l.b16 %v347
    %v1102 = vunpack.c.l.b16 %v348
    %v1103 = vunpack.c.l.b16 %v349
    %v1104 = vunpack.c.l.b16 %v350
    %v1105 = vunpack.c.l.b16 %v351
    %v1106 = vunpack.c.l.b16 %v352
    %v1107 = vunpack.c.l.b16 %v353
    %v1108 = vunpack.c.l.b16 %v354
    %v1109 = vunpack.c.l.b16 %v355
    %v1110 = vunpack.c.l.b16 %v356
    %v1111 = vunpack.c.l.b16 %v357
    %v1112 = vunpack.c.l.b16 %v358
    %v1113 = vunpack.c.l.b16 %v359
    %v1114 = vunpack.c.l.b16 %v360
    %v1115 = vunpack.c.l.b16 %v361
    %v1116 = vunpack.c.l.b16 %v362
    %v1117 = vunpack.c.l.b16 %v363
    %v1118 = vunpack.c.l.b16 %v364
    %v1119 = vunpack.c.l.b16 %v365
    %v1120 = vunpack.c.l.b16 %v366
    %v1121 = vunpack.c.l.b16 %v367
    %v1122 = vunpack.c.l.b16 %v368
    %v1123 = vunpack.c.l.b16 %v369
    %v1124 = vunpack.c.l.b16 %v370
    %v1125 = vunpack.c.l.b16 %v371
    %v1126 = vunpack.c.l.b16 %v372
    %v1127 = vunpack.c.l.b16 %v373
    %v1128 = vunpack.c.l.b16 %v374
    %v1129 = vunpack.c.l.b16 %v375
    %v1130 = vunpack.c.l.b16 %v376
    %v1131 = vunpack.c.l.b16 %v377
    %v1132 = vunpack.c.l.b16 %v378
    %v1133 = vunpack.c.l.b16 %v379
    %v1134 = vunpack.c.l.b16 %v380
    %v1135 = vunpack.c.l.b16 %v381
    %v1136 = vunpack.c.l.b16 %v382
    %v1137 = vunpack.c.l.b16 %v383
    %v1138 = vunpack.c.l.b16 %v384
    %v1139 = vunpack.c.l.b16 %v385
    %v1140 = vunpack.c.l.b16 %v386
    %v1141 = vunpack.c.l.b16 %v387
    %v1142 = vunpack.c.l.b16 %v388
    %v1143 = vunpack.c.l.b16 %v389
    %v1144 = vunpack.c.l.b16 %v390
    %v1145 = vunpack.c.l.b16 %v391
    %v1146 = vunpack.c.l.b16 %v392
    %v1147 = vunpack.c.l.b16 %v393
    %v1148 = vunpack.c.l.b16 %v394
    %v1149 = vunpack.c.l.b16 %v395
    %v1150 = vunpack.c.l.b16 %v396
    %v1151 = vunpack.c.l.b16 %v397
    %v1152 = vunpack.c.l.b16 %v398
    %v1153 = vunpack.c.l.b16 %v399
    %v1154 = vunpack.c.l.b16 %v400
    %v1155 = vunpack.c.l.b16 %v401
    %v1156 = vpack.c.b16 %v1093, %v1092
    %v1157 = vpack.c.b16 %v1095, %v1094
    %v1158 = vpack.c.b16 %v1097, %v1096
    %v1159 = vpack.c.b16 %v1099, %v1098
    %v1160 = vpack.c.b16 %v1101, %v1100
    %v1161 = vpack.c.b16 %v1103, %v1102
    %v1162 = vpack.c.b16 %v1105, %v1104
    %v1163 = vpack.c.b16 %v1107, %v1106
    %v1164 = vpack.c.b16 %v1109, %v1108
    %v1165 = vpack.c.b16 %v1111, %v1110
    %v1166 = vpack.c.b16 %v1113, %v1112
    %v1167 = vpack.c.b16 %v1115, %v1114
    %v1168 = vpack.c.b16 %v1117, %v1116
    %v1169 = vpack.c.b16 %v1119, %v1118
    %v1170 = vpack.c.b16 %v1121, %v1120
    %v1171 = vpack.c.b16 %v1123, %v1122
    %v1172 = vpack.c.b16 %v1125, %v1124
    %v1173 = vpack.c.b16 %v1127, %v1126
    %v1174 = vpack.c.b16 %v1129, %v1128
    %v1175 = vpack.c.b16 %v1131, %v1130
    %v1176 = vpack.c.b16 %v1133, %v1132
    %v1177 = vpack.c.b16 %v1135, %v1134
    %v1178 = vpack.c.b16 %v1137, %v1136
    %v1179 = vpack.c.b16 %v1139, %v1138
    %v1180 = vpack.c.b16 %v1141, %v1140
    %v1181 = vpack.c.b16 %v1143, %v1142
    %v1182 = vpack.c.b16 %v1145, %v1144
    %v1183 = vpack.c.b16 %v1147, %v1146
    %v1184 = vpack.c.b16 %v1149, %v1148
    %v1185 = vpack.c.b16 %v1151, %v1150
    %v1186 = vpack.c.b16 %v1153, %v1152
    %v1187 = vpack.c.b16 %v1155, %v1154
    %1220 = vmatprep.subr.bf16.mxu0 0
    %1221 = vmatpush1.bf16.msra.mxu0 %v1163
    %1222 = vmatprep.subr.bf16.mxu0 0
    %1223 = vmatpush1.bf16.msra.mxu0 %v1162
    %1224 = vmatprep.subr.bf16.mxu0 0
    %1225 = vmatpush1.bf16.msra.mxu0 %v1161
    %1226 = vmatprep.subr.bf16.mxu0 0
    %1227 = vmatpush1.bf16.msra.mxu0 %v1160
    %1228 = vmatprep.subr.bf16.mxu0 0
    %1229 = vmatpush1.bf16.msra.mxu0 %v1159
    %1230 = vmatprep.subr.bf16.mxu0 0
    %1231 = vmatpush1.bf16.msra.mxu0 %v1158
    %1232 = vmatprep.subr.bf16.mxu0 0
    %1233 = vmatpush1.bf16.msra.mxu0 %v1157
    %1234 = vmatprep.subr.bf16.mxu0 0
    %1235 = vmatpush1.bf16.msra.mxu0 %v1156
    %1236 = vmatprep.subr.bf16.mxu0 0
    %1237 = vmatpush2.bf16.msra.mxu0 %v1171
    %1238 = vmatprep.subr.bf16.mxu0 0
    %1239 = vmatpush2.bf16.msra.mxu0 %v1170
    %1240 = vmatprep.subr.bf16.mxu0 0
    %1241 = vmatpush2.bf16.msra.mxu0 %v1169
    %1242 = vmatprep.subr.bf16.mxu0 0
    %1243 = vmatpush2.bf16.msra.mxu0 %v1168
    %1244 = vmatprep.subr.bf16.mxu0 0
    %1245 = vmatpush2.bf16.msra.mxu0 %v1167
    %1246 = vmatprep.subr.bf16.mxu0 0
    %1247 = vmatpush2.bf16.msra.mxu0 %v1166
    %1248 = vmatprep.subr.bf16.mxu0 0
    %1249 = vmatpush2.bf16.msra.mxu0 %v1165
    %1250 = vmatprep.subr.bf16.mxu0 0
    %1251 = vmatpush2.bf16.msra.mxu0 %v1164
    %1252 = vmatprep.mubr.bf16.mxu0 %v331
    %1253 = vmatmul.mubr.bf16.gmra.mxu0 %v330
    %v1254 = vpop.f32.mrf.mxu0
    %v1255 = vadd.f32 %v1014, %v1254
    %v1256 = vpop.f32.mrf.mxu0
    %v1257 = vpop.f32.mrf.mxu0
    %v1258 = vadd.f32 %v1017, %v1257
    %v1259 = vpop.f32.mrf.mxu0
    %1260 = vmatprep.mubr.bf16.mxu0 %v335
    %1261 = vmatmul.mubr.bf16.gmra.mxu0 %v334
    %v1262 = vpop.f32.mrf.mxu0
    %v1263 = vadd.f32 %v1022, %v1262
    %v1264 = vpop.f32.mrf.mxu0
    %v1265 = vpop.f32.mrf.mxu0
    %v1266 = vadd.f32 %v1025, %v1265
    %v1267 = vpop.f32.mrf.mxu0
    %1268 = vdwg.mxu0
    %1269 = vmatprep.subr.bf16.mxu0 0
    %1270 = vmatpush1.bf16.msra.mxu0 %v1179
    %1271 = vmatprep.subr.bf16.mxu0 0
    %1272 = vmatpush1.bf16.msra.mxu0 %v1178
    %1273 = vmatprep.subr.bf16.mxu0 0
    %1274 = vmatpush1.bf16.msra.mxu0 %v1177
    %1275 = vmatprep.subr.bf16.mxu0 0
    %1276 = vmatpush1.bf16.msra.mxu0 %v1176
    %1277 = vmatprep.subr.bf16.mxu0 0
    %1278 = vmatpush1.bf16.msra.mxu0 %v1175
    %1279 = vmatprep.subr.bf16.mxu0 0
    %1280 = vmatpush1.bf16.msra.mxu0 %v1174
    %1281 = vmatprep.subr.bf16.mxu0 0
    %1282 = vmatpush1.bf16.msra.mxu0 %v1173
    %1283 = vmatprep.subr.bf16.mxu0 0
    %1284 = vmatpush1.bf16.msra.mxu0 %v1172
    %1285 = vmatprep.subr.bf16.mxu0 0
    %1286 = vmatpush2.bf16.msra.mxu0 %v1187
    %1287 = vmatprep.subr.bf16.mxu0 0
    %1288 = vmatpush2.bf16.msra.mxu0 %v1186
    %1289 = vmatprep.subr.bf16.mxu0 0
    %1290 = vmatpush2.bf16.msra.mxu0 %v1185
    %1291 = vmatprep.subr.bf16.mxu0 0
    %1292 = vmatpush2.bf16.msra.mxu0 %v1184
    %1293 = vmatprep.subr.bf16.mxu0 0
    %1294 = vmatpush2.bf16.msra.mxu0 %v1183
    %1295 = vmatprep.subr.bf16.mxu0 0
    %1296 = vmatpush2.bf16.msra.mxu0 %v1182
    %1297 = vmatprep.subr.bf16.mxu0 0
    %1298 = vmatpush2.bf16.msra.mxu0 %v1181
    %1299 = vmatprep.subr.bf16.mxu0 0
    %1300 = vmatpush2.bf16.msra.mxu0 %v1180
    %1301 = vmatprep.mubr.bf16.mxu0 %v333
    %1302 = vmatmul.mubr.bf16.gmra.mxu0 %v332
    %v1303 = vpop.f32.mrf.mxu0
    %v1304 = vadd.f32 %v1255, %v1303
    %v1305 = vpop.f32.mrf.mxu0
    %v1306 = vpop.f32.mrf.mxu0
    %v1307 = vadd.f32 %v1258, %v1306
    %v1308 = vpop.f32.mrf.mxu0
    %1309 = vmatprep.mubr.bf16.mxu0 %v337
    %1310 = vmatmul.mubr.bf16.gmra.mxu0 %v336
    %v1311 = vpop.f32.mrf.mxu0
    %v1312 = vadd.f32 %v1263, %v1311
    %v1313 = vpop.f32.mrf.mxu0
    %v1314 = vpop.f32.mrf.mxu0
    %v1315 = vadd.f32 %v1266, %v1314
    %v1316 = vpop.f32.mrf.mxu0
    %1317 = vdwg.mxu0
    %v1318 = vld [vmem:[#allocation2 + $0x40] sm:$0x3f]
    %v1319 = vld [vmem:[#allocation2 + $0x48] sm:$0x3f]
    %v1320 = vld [vmem:[#allocation2 + $0x50] sm:$0x3f]
    %v1321 = vld [vmem:[#allocation2 + $0x58] sm:$0x3f]
    %v1322 = vld [vmem:[%s2 + $0x8] sm:$0xf]
    %v1324 = vlaneseq
    %v1325 = vshrl.u32 %v1324, 7
    %v1326 = vsub.s32 0, %v1325
    %v1327 = vrot.slane %v1322, %v1326
    %v1328 = vlaneseq
    %v1329 = vshrl.u32 %v1328, 7
    %v1330 = vsub.s32 1, %v1329
    %v1331 = vrot.slane %v1322, %v1330
    %v1332 = vlaneseq
    %v1333 = vshrl.u32 %v1332, 7
    %v1334 = vsub.s32 2, %v1333
    %v1335 = vrot.slane %v1322, %v1334
    %v1336 = vlaneseq
    %v1337 = vshrl.u32 %v1336, 7
    %v1338 = vsub.s32 3, %v1337
    %v1339 = vrot.slane %v1322, %v1338
    %v1345 = vsel %vm91, %v1318, 0
    %v1348 = vsel %vm91, %v1319, 0
    %v1351 = vsel %vm91, %v1320, 0
    %v1354 = vsel %vm91, %v1321, 0
    %1356 = vmatprep.subr.mxu0 0.0
    %1357 = vmatpush1.msra.mxu0 0.0
    %1358 = vmatprep.subr.mxu0 0.0
    %1359 = vmatpush1.msra.mxu0 0.0
    %1360 = vmatprep.subr.mxu0 0.0
    %1361 = vmatpush1.msra.mxu0 0.0
    %1362 = vmatprep.subr.mxu0 0.0
    %1363 = vmatpush1.msra.mxu0 0.0
    %1364 = vmatprep.subr.mxu0 0.0
    %1365 = vmatpush1.msra.mxu0 0.0
    %1366 = vmatprep.subr.mxu0 0.0
    %1367 = vmatpush1.msra.mxu0 0.0
    %1368 = vmatprep.subr.mxu0 0.0
    %1369 = vmatpush1.msra.mxu0 0.0
    %1370 = vmatprep.subr.mxu0 0.0
    %1371 = vmatpush1.msra.mxu0 0.0
    %1372 = vmatprep.subr.mxu0 0.0
    %1373 = vmatpush1.msra.mxu0 0.0
    %1374 = vmatprep.subr.mxu0 0.0
    %1375 = vmatpush1.msra.mxu0 0.0
    %1376 = vmatprep.subr.mxu0 0.0
    %1377 = vmatpush1.msra.mxu0 0.0
    %1378 = vmatprep.subr.mxu0 0.0
    %1379 = vmatpush1.msra.mxu0 0.0
    %1380 = vmatprep.subr.mxu0 0.0
    %1381 = vmatpush1.msra.mxu0 0.0
    %1382 = vmatprep.subr.mxu0 0.0
    %1383 = vmatpush1.msra.mxu0 0.0
    %1384 = vmatprep.subr.mxu0 0.0
    %1385 = vmatpush1.msra.mxu0 0.0
    %1386 = vmatprep.subr.mxu0 %v1348
    %1387 = vmatpush1.msra.mxu0 %v1345
    %1388 = vmatprep.subr.mxu0 0.0
    %1389 = vmatpush2.msra.mxu0 0.0
    %1390 = vmatprep.subr.mxu0 0.0
    %1391 = vmatpush2.msra.mxu0 0.0
    %1392 = vmatprep.subr.mxu0 0.0
    %1393 = vmatpush2.msra.mxu0 0.0
    %1394 = vmatprep.subr.mxu0 0.0
    %1395 = vmatpush2.msra.mxu0 0.0
    %1396 = vmatprep.subr.mxu0 0.0
    %1397 = vmatpush2.msra.mxu0 0.0
    %1398 = vmatprep.subr.mxu0 0.0
    %1399 = vmatpush2.msra.mxu0 0.0
    %1400 = vmatprep.subr.mxu0 0.0
    %1401 = vmatpush2.msra.mxu0 0.0
    %1402 = vmatprep.subr.mxu0 0.0
    %1403 = vmatpush2.msra.mxu0 0.0
    %1404 = vmatprep.subr.mxu0 0.0
    %1405 = vmatpush2.msra.mxu0 0.0
    %1406 = vmatprep.subr.mxu0 0.0
    %1407 = vmatpush2.msra.mxu0 0.0
    %1408 = vmatprep.subr.mxu0 0.0
    %1409 = vmatpush2.msra.mxu0 0.0
    %1410 = vmatprep.subr.mxu0 0.0
    %1411 = vmatpush2.msra.mxu0 0.0
    %1412 = vmatprep.subr.mxu0 0.0
    %1413 = vmatpush2.msra.mxu0 0.0
    %1414 = vmatprep.subr.mxu0 0.0
    %1415 = vmatpush2.msra.mxu0 0.0
    %1416 = vmatprep.subr.mxu0 0.0
    %1417 = vmatpush2.msra.mxu0 0.0
    %1418 = vmatprep.subr.mxu0 0.0
    %1419 = vmatpush2.msra.mxu0 0.0
    %1420 = vmatprep.mubr.f32.mxu0 0.0
    %1421 = vmatmul.mubr.f32.gmra.mxu0 %v80
    %v1422 = vpop.f32.mrf.mxu0
    %v1423 = vadd.f32 %v1327, %v1422
    %v1424 = vpop.f32.mrf.mxu0
    %v1425 = vadd.f32 %v1331, %v1424
    %1426 = vmatprep.mubr.f32.mxu0 0.0
    %1427 = vmatmul.mubr.f32.gmra.mxu0 %v83
    %v1428 = vpop.f32.mrf.mxu0
    %v1429 = vadd.f32 %v1327, %v1428
    %v1430 = vpop.f32.mrf.mxu0
    %v1431 = vadd.f32 %v1331, %v1430
    %1432 = vmatprep.mubr.f32.mxu0 0.0
    %1433 = vmatmul.mubr.f32.gmra.mxu0 %v86
    %v1434 = vpop.f32.mrf.mxu0
    %v1435 = vadd.f32 %v1327, %v1434
    %v1436 = vpop.f32.mrf.mxu0
    %v1437 = vadd.f32 %v1331, %v1436
    %1438 = vmatprep.mubr.f32.mxu0 0.0
    %1439 = vmatmul.mubr.f32.gmra.mxu0 %v89
    %v1440 = vpop.f32.mrf.mxu0
    %v1441 = vadd.f32 %v1327, %v1440
    %v1442 = vpop.f32.mrf.mxu0
    %v1443 = vadd.f32 %v1331, %v1442
    %1444 = vdwg.mxu0
    %1445 = vmatprep.subr.mxu0 0.0
    %1446 = vmatpush1.msra.mxu0 0.0
    %1447 = vmatprep.subr.mxu0 0.0
    %1448 = vmatpush1.msra.mxu0 0.0
    %1449 = vmatprep.subr.mxu0 0.0
    %1450 = vmatpush1.msra.mxu0 0.0
    %1451 = vmatprep.subr.mxu0 0.0
    %1452 = vmatpush1.msra.mxu0 0.0
    %1453 = vmatprep.subr.mxu0 0.0
    %1454 = vmatpush1.msra.mxu0 0.0
    %1455 = vmatprep.subr.mxu0 0.0
    %1456 = vmatpush1.msra.mxu0 0.0
    %1457 = vmatprep.subr.mxu0 0.0
    %1458 = vmatpush1.msra.mxu0 0.0
    %1459 = vmatprep.subr.mxu0 0.0
    %1460 = vmatpush1.msra.mxu0 0.0
    %1461 = vmatprep.subr.mxu0 0.0
    %1462 = vmatpush1.msra.mxu0 0.0
    %1463 = vmatprep.subr.mxu0 0.0
    %1464 = vmatpush1.msra.mxu0 0.0
    %1465 = vmatprep.subr.mxu0 0.0
    %1466 = vmatpush1.msra.mxu0 0.0
    %1467 = vmatprep.subr.mxu0 0.0
    %1468 = vmatpush1.msra.mxu0 0.0
    %1469 = vmatprep.subr.mxu0 0.0
    %1470 = vmatpush1.msra.mxu0 0.0
    %1471 = vmatprep.subr.mxu0 0.0
    %1472 = vmatpush1.msra.mxu0 0.0
    %1473 = vmatprep.subr.mxu0 0.0
    %1474 = vmatpush1.msra.mxu0 0.0
    %1475 = vmatprep.subr.mxu0 %v1354
    %1476 = vmatpush1.msra.mxu0 %v1351
    %1477 = vmatprep.subr.mxu0 0.0
    %1478 = vmatpush2.msra.mxu0 0.0
    %1479 = vmatprep.subr.mxu0 0.0
    %1480 = vmatpush2.msra.mxu0 0.0
    %1481 = vmatprep.subr.mxu0 0.0
    %1482 = vmatpush2.msra.mxu0 0.0
    %1483 = vmatprep.subr.mxu0 0.0
    %1484 = vmatpush2.msra.mxu0 0.0
    %1485 = vmatprep.subr.mxu0 0.0
    %1486 = vmatpush2.msra.mxu0 0.0
    %1487 = vmatprep.subr.mxu0 0.0
    %1488 = vmatpush2.msra.mxu0 0.0
    %1489 = vmatprep.subr.mxu0 0.0
    %1490 = vmatpush2.msra.mxu0 0.0
    %1491 = vmatprep.subr.mxu0 0.0
    %1492 = vmatpush2.msra.mxu0 0.0
    %1493 = vmatprep.subr.mxu0 0.0
    %1494 = vmatpush2.msra.mxu0 0.0
    %1495 = vmatprep.subr.mxu0 0.0
    %1496 = vmatpush2.msra.mxu0 0.0
    %1497 = vmatprep.subr.mxu0 0.0
    %1498 = vmatpush2.msra.mxu0 0.0
    %1499 = vmatprep.subr.mxu0 0.0
    %1500 = vmatpush2.msra.mxu0 0.0
    %1501 = vmatprep.subr.mxu0 0.0
    %1502 = vmatpush2.msra.mxu0 0.0
    %1503 = vmatprep.subr.mxu0 0.0
    %1504 = vmatpush2.msra.mxu0 0.0
    %1505 = vmatprep.subr.mxu0 0.0
    %1506 = vmatpush2.msra.mxu0 0.0
    %1507 = vmatprep.subr.mxu0 0.0
    %1508 = vmatpush2.msra.mxu0 0.0
    %1509 = vmatprep.mubr.f32.mxu0 0.0
    %1510 = vmatmul.mubr.f32.gmra.mxu0 %v80
    %v1511 = vpop.f32.mrf.mxu0
    %v1512 = vadd.f32 %v1335, %v1511
    %v1513 = vpop.f32.mrf.mxu0
    %v1514 = vadd.f32 %v1339, %v1513
    %1515 = vmatprep.mubr.f32.mxu0 0.0
    %1516 = vmatmul.mubr.f32.gmra.mxu0 %v83
    %v1517 = vpop.f32.mrf.mxu0
    %v1518 = vadd.f32 %v1335, %v1517
    %v1519 = vpop.f32.mrf.mxu0
    %v1520 = vadd.f32 %v1339, %v1519
    %1521 = vmatprep.mubr.f32.mxu0 0.0
    %1522 = vmatmul.mubr.f32.gmra.mxu0 %v86
    %v1523 = vpop.f32.mrf.mxu0
    %v1524 = vadd.f32 %v1335, %v1523
    %v1525 = vpop.f32.mrf.mxu0
    %v1526 = vadd.f32 %v1339, %v1525
    %1527 = vmatprep.mubr.f32.mxu0 0.0
    %1528 = vmatmul.mubr.f32.gmra.mxu0 %v89
    %v1529 = vpop.f32.mrf.mxu0
    %v1530 = vadd.f32 %v1335, %v1529
    %v1531 = vpop.f32.mrf.mxu0
    %v1532 = vadd.f32 %v1339, %v1531
    %1533 = vdwg.mxu0
    %vm1534 = vcmp.ge.f32.partialorder %v1423, 0.0
    %vm1535 = vcmp.ge.f32.partialorder %v1425, 0.0
    %vm1536 = vcmp.ge.f32.partialorder %v1512, 0.0
    %vm1537 = vcmp.ge.f32.partialorder %v1514, 0.0
    %vm1538 = vcmp.ge.f32.partialorder %v1429, 0.0
    %vm1539 = vcmp.ge.f32.partialorder %v1431, 0.0
    %vm1540 = vcmp.ge.f32.partialorder %v1518, 0.0
    %vm1541 = vcmp.ge.f32.partialorder %v1520, 0.0
    %vm1542 = vcmp.ge.f32.partialorder %v1435, 0.0
    %vm1543 = vcmp.ge.f32.partialorder %v1437, 0.0
    %vm1544 = vcmp.ge.f32.partialorder %v1524, 0.0
    %vm1545 = vcmp.ge.f32.partialorder %v1526, 0.0
    %vm1546 = vcmp.ge.f32.partialorder %v1441, 0.0
    %vm1547 = vcmp.ge.f32.partialorder %v1443, 0.0
    %vm1548 = vcmp.ge.f32.partialorder %v1530, 0.0
    %vm1549 = vcmp.ge.f32.partialorder %v1532, 0.0
    %v1550 = vmul.f32 %v1423, 0.01
    %v1551 = vmul.f32 %v1425, 0.01
    %v1552 = vmul.f32 %v1512, 0.01
    %v1553 = vmul.f32 %v1514, 0.01
    %v1554 = vmul.f32 %v1429, 0.01
    %v1555 = vmul.f32 %v1431, 0.01
    %v1556 = vmul.f32 %v1518, 0.01
    %v1557 = vmul.f32 %v1520, 0.01
    %v1558 = vmul.f32 %v1435, 0.01
    %v1559 = vmul.f32 %v1437, 0.01
    %v1560 = vmul.f32 %v1524, 0.01
    %v1561 = vmul.f32 %v1526, 0.01
    %v1562 = vmul.f32 %v1441, 0.01
    %v1563 = vmul.f32 %v1443, 0.01
    %v1564 = vmul.f32 %v1530, 0.01
    %v1565 = vmul.f32 %v1532, 0.01
    %v1566 = vsel %vm1534, %v1423, %v1550
    %v1567 = vsel %vm1535, %v1425, %v1551
    %v1568 = vsel %vm1536, %v1512, %v1552
    %v1569 = vsel %vm1537, %v1514, %v1553
    %v1570 = vsel %vm1538, %v1429, %v1554
    %v1571 = vsel %vm1539, %v1431, %v1555
    %v1572 = vsel %vm1540, %v1518, %v1556
    %v1573 = vsel %vm1541, %v1520, %v1557
    %v1574 = vsel %vm1542, %v1435, %v1558
    %v1575 = vsel %vm1543, %v1437, %v1559
    %v1576 = vsel %vm1544, %v1524, %v1560
    %v1577 = vsel %vm1545, %v1526, %v1561
    %v1578 = vsel %vm1546, %v1441, %v1562
    %v1579 = vsel %vm1547, %v1443, %v1563
    %v1580 = vsel %vm1548, %v1530, %v1564
    %v1581 = vsel %vm1549, %v1532, %v1565
    %v1582 = vpack.c.bf16 %v1570, %v1566
    %v1583 = vpack.c.bf16 %v1571, %v1567
    %v1584 = vpack.c.bf16 %v1572, %v1568
    %v1585 = vpack.c.bf16 %v1573, %v1569
    %v1586 = vpack.c.bf16 %v1578, %v1574
    %v1587 = vpack.c.bf16 %v1579, %v1575
    %v1588 = vpack.c.bf16 %v1580, %v1576
    %v1589 = vpack.c.bf16 %v1581, %v1577
    %v1590 = vld [vmem:[#allocation5 + $0x200] sm:$0xf]
    %v1591 = vld [vmem:[#allocation5 + $0x204] sm:$0xf]
    %v1592 = vld [vmem:[#allocation5 + $0x208] sm:$0xf]
    %v1593 = vld [vmem:[#allocation5 + $0x20c] sm:$0xf]
    %v1594 = vld [vmem:[#allocation5 + $0x210] sm:$0xf]
    %v1595 = vld [vmem:[#allocation5 + $0x214] sm:$0xf]
    %v1596 = vld [vmem:[#allocation5 + $0x218] sm:$0xf]
    %v1597 = vld [vmem:[#allocation5 + $0x21c] sm:$0xf]
    %v1598 = vld [vmem:[#allocation5 + $0x220] sm:$0xf]
    %v1599 = vld [vmem:[#allocation5 + $0x224] sm:$0xf]
    %v1600 = vld [vmem:[#allocation5 + $0x228] sm:$0xf]
    %v1601 = vld [vmem:[#allocation5 + $0x22c] sm:$0xf]
    %v1602 = vld [vmem:[#allocation5 + $0x230] sm:$0xf]
    %v1603 = vld [vmem:[#allocation5 + $0x234] sm:$0xf]
    %v1604 = vld [vmem:[#allocation5 + $0x238] sm:$0xf]
    %v1605 = vld [vmem:[#allocation5 + $0x23c] sm:$0xf]
    %v1606 = vld [vmem:[#allocation5 + $0x240] sm:$0xf]
    %v1607 = vld [vmem:[#allocation5 + $0x244] sm:$0xf]
    %v1608 = vld [vmem:[#allocation5 + $0x248] sm:$0xf]
    %v1609 = vld [vmem:[#allocation5 + $0x24c] sm:$0xf]
    %v1610 = vld [vmem:[#allocation5 + $0x250] sm:$0xf]
    %v1611 = vld [vmem:[#allocation5 + $0x254] sm:$0xf]
    %v1612 = vld [vmem:[#allocation5 + $0x258] sm:$0xf]
    %v1613 = vld [vmem:[#allocation5 + $0x25c] sm:$0xf]
    %v1614 = vld [vmem:[#allocation5 + $0x260] sm:$0xf]
    %v1615 = vld [vmem:[#allocation5 + $0x264] sm:$0xf]
    %v1616 = vld [vmem:[#allocation5 + $0x268] sm:$0xf]
    %v1617 = vld [vmem:[#allocation5 + $0x26c] sm:$0xf]
    %v1618 = vld [vmem:[#allocation5 + $0x270] sm:$0xf]
    %v1619 = vld [vmem:[#allocation5 + $0x274] sm:$0xf]
    %v1620 = vld [vmem:[#allocation5 + $0x278] sm:$0xf]
    %v1621 = vld [vmem:[#allocation5 + $0x27c] sm:$0xf]
    %v1622 = vld [vmem:[#allocation5 + $0x280] sm:$0xf]
    %v1623 = vld [vmem:[#allocation5 + $0x284] sm:$0xf]
    %v1624 = vld [vmem:[#allocation5 + $0x288] sm:$0xf]
    %v1625 = vld [vmem:[#allocation5 + $0x28c] sm:$0xf]
    %v1626 = vld [vmem:[#allocation5 + $0x290] sm:$0xf]
    %v1627 = vld [vmem:[#allocation5 + $0x294] sm:$0xf]
    %v1628 = vld [vmem:[#allocation5 + $0x298] sm:$0xf]
    %v1629 = vld [vmem:[#allocation5 + $0x29c] sm:$0xf]
    %v1630 = vld [vmem:[#allocation5 + $0x2a0] sm:$0xf]
    %v1631 = vld [vmem:[#allocation5 + $0x2a4] sm:$0xf]
    %v1632 = vld [vmem:[#allocation5 + $0x2a8] sm:$0xf]
    %v1633 = vld [vmem:[#allocation5 + $0x2ac] sm:$0xf]
    %v1634 = vld [vmem:[#allocation5 + $0x2b0] sm:$0xf]
    %v1635 = vld [vmem:[#allocation5 + $0x2b4] sm:$0xf]
    %v1636 = vld [vmem:[#allocation5 + $0x2b8] sm:$0xf]
    %v1637 = vld [vmem:[#allocation5 + $0x2bc] sm:$0xf]
    %v1638 = vld [vmem:[#allocation5 + $0x2c0] sm:$0xf]
    %v1639 = vld [vmem:[#allocation5 + $0x2c4] sm:$0xf]
    %v1640 = vld [vmem:[#allocation5 + $0x2c8] sm:$0xf]
    %v1641 = vld [vmem:[#allocation5 + $0x2cc] sm:$0xf]
    %v1642 = vld [vmem:[#allocation5 + $0x2d0] sm:$0xf]
    %v1643 = vld [vmem:[#allocation5 + $0x2d4] sm:$0xf]
    %v1644 = vld [vmem:[#allocation5 + $0x2d8] sm:$0xf]
    %v1645 = vld [vmem:[#allocation5 + $0x2dc] sm:$0xf]
    %v1646 = vld [vmem:[#allocation5 + $0x2e0] sm:$0xf]
    %v1647 = vld [vmem:[#allocation5 + $0x2e4] sm:$0xf]
    %v1648 = vld [vmem:[#allocation5 + $0x2e8] sm:$0xf]
    %v1649 = vld [vmem:[#allocation5 + $0x2ec] sm:$0xf]
    %v1650 = vld [vmem:[#allocation5 + $0x2f0] sm:$0xf]
    %v1651 = vld [vmem:[#allocation5 + $0x2f4] sm:$0xf]
    %v1652 = vld [vmem:[#allocation5 + $0x2f8] sm:$0xf]
    %v1653 = vld [vmem:[#allocation5 + $0x2fc] sm:$0xf]
    %v1718 = vunpack.c.l.b16 %v1590
    %v1719 = vunpack.c.l.b16 %v1591
    %v1720 = vunpack.c.l.b16 %v1592
    %v1721 = vunpack.c.l.b16 %v1593
    %v1722 = vunpack.c.l.b16 %v1594
    %v1723 = vunpack.c.l.b16 %v1595
    %v1724 = vunpack.c.l.b16 %v1596
    %v1725 = vunpack.c.l.b16 %v1597
    %v1726 = vunpack.c.l.b16 %v1598
    %v1727 = vunpack.c.l.b16 %v1599
    %v1728 = vunpack.c.l.b16 %v1600
    %v1729 = vunpack.c.l.b16 %v1601
    %v1730 = vunpack.c.l.b16 %v1602
    %v1731 = vunpack.c.l.b16 %v1603
    %v1732 = vunpack.c.l.b16 %v1604
    %v1733 = vunpack.c.l.b16 %v1605
    %v1734 = vunpack.c.l.b16 %v1606
    %v1735 = vunpack.c.l.b16 %v1607
    %v1736 = vunpack.c.l.b16 %v1608
    %v1737 = vunpack.c.l.b16 %v1609
    %v1738 = vunpack.c.l.b16 %v1610
    %v1739 = vunpack.c.l.b16 %v1611
    %v1740 = vunpack.c.l.b16 %v1612
    %v1741 = vunpack.c.l.b16 %v1613
    %v1742 = vunpack.c.l.b16 %v1614
    %v1743 = vunpack.c.l.b16 %v1615
    %v1744 = vunpack.c.l.b16 %v1616
    %v1745 = vunpack.c.l.b16 %v1617
    %v1746 = vunpack.c.l.b16 %v1618
    %v1747 = vunpack.c.l.b16 %v1619
    %v1748 = vunpack.c.l.b16 %v1620
    %v1749 = vunpack.c.l.b16 %v1621
    %v1750 = vunpack.c.l.b16 %v1622
    %v1751 = vunpack.c.l.b16 %v1623
    %v1752 = vunpack.c.l.b16 %v1624
    %v1753 = vunpack.c.l.b16 %v1625
    %v1754 = vunpack.c.l.b16 %v1626
    %v1755 = vunpack.c.l.b16 %v1627
    %v1756 = vunpack.c.l.b16 %v1628
    %v1757 = vunpack.c.l.b16 %v1629
    %v1758 = vunpack.c.l.b16 %v1630
    %v1759 = vunpack.c.l.b16 %v1631
    %v1760 = vunpack.c.l.b16 %v1632
    %v1761 = vunpack.c.l.b16 %v1633
    %v1762 = vunpack.c.l.b16 %v1634
    %v1763 = vunpack.c.l.b16 %v1635
    %v1764 = vunpack.c.l.b16 %v1636
    %v1765 = vunpack.c.l.b16 %v1637
    %v1766 = vunpack.c.l.b16 %v1638
    %v1767 = vunpack.c.l.b16 %v1639
    %v1768 = vunpack.c.l.b16 %v1640
    %v1769 = vunpack.c.l.b16 %v1641
    %v1770 = vunpack.c.l.b16 %v1642
    %v1771 = vunpack.c.l.b16 %v1643
    %v1772 = vunpack.c.l.b16 %v1644
    %v1773 = vunpack.c.l.b16 %v1645
    %v1774 = vunpack.c.l.b16 %v1646
    %v1775 = vunpack.c.l.b16 %v1647
    %v1776 = vunpack.c.l.b16 %v1648
    %v1777 = vunpack.c.l.b16 %v1649
    %v1778 = vunpack.c.l.b16 %v1650
    %v1779 = vunpack.c.l.b16 %v1651
    %v1780 = vunpack.c.l.b16 %v1652
    %v1781 = vunpack.c.l.b16 %v1653
    %v1782 = vpack.c.b16 %v1719, %v1718
    %v1783 = vpack.c.b16 %v1721, %v1720
    %v1784 = vpack.c.b16 %v1723, %v1722
    %v1785 = vpack.c.b16 %v1725, %v1724
    %v1786 = vpack.c.b16 %v1727, %v1726
    %v1787 = vpack.c.b16 %v1729, %v1728
    %v1788 = vpack.c.b16 %v1731, %v1730
    %v1789 = vpack.c.b16 %v1733, %v1732
    %v1790 = vpack.c.b16 %v1735, %v1734
    %v1791 = vpack.c.b16 %v1737, %v1736
    %v1792 = vpack.c.b16 %v1739, %v1738
    %v1793 = vpack.c.b16 %v1741, %v1740
    %v1794 = vpack.c.b16 %v1743, %v1742
    %v1795 = vpack.c.b16 %v1745, %v1744
    %v1796 = vpack.c.b16 %v1747, %v1746
    %v1797 = vpack.c.b16 %v1749, %v1748
    %v1798 = vpack.c.b16 %v1751, %v1750
    %v1799 = vpack.c.b16 %v1753, %v1752
    %v1800 = vpack.c.b16 %v1755, %v1754
    %v1801 = vpack.c.b16 %v1757, %v1756
    %v1802 = vpack.c.b16 %v1759, %v1758
    %v1803 = vpack.c.b16 %v1761, %v1760
    %v1804 = vpack.c.b16 %v1763, %v1762
    %v1805 = vpack.c.b16 %v1765, %v1764
    %v1806 = vpack.c.b16 %v1767, %v1766
    %v1807 = vpack.c.b16 %v1769, %v1768
    %v1808 = vpack.c.b16 %v1771, %v1770
    %v1809 = vpack.c.b16 %v1773, %v1772
    %v1810 = vpack.c.b16 %v1775, %v1774
    %v1811 = vpack.c.b16 %v1777, %v1776
    %v1812 = vpack.c.b16 %v1779, %v1778
    %v1813 = vpack.c.b16 %v1781, %v1780
    %1846 = vmatprep.subr.bf16.mxu0 0
    %1847 = vmatpush1.bf16.msra.mxu0 %v1789
    %1848 = vmatprep.subr.bf16.mxu0 0
    %1849 = vmatpush1.bf16.msra.mxu0 %v1788
    %1850 = vmatprep.subr.bf16.mxu0 0
    %1851 = vmatpush1.bf16.msra.mxu0 %v1787
    %1852 = vmatprep.subr.bf16.mxu0 0
    %1853 = vmatpush1.bf16.msra.mxu0 %v1786
    %1854 = vmatprep.subr.bf16.mxu0 0
    %1855 = vmatpush1.bf16.msra.mxu0 %v1785
    %1856 = vmatprep.subr.bf16.mxu0 0
    %1857 = vmatpush1.bf16.msra.mxu0 %v1784
    %1858 = vmatprep.subr.bf16.mxu0 0
    %1859 = vmatpush1.bf16.msra.mxu0 %v1783
    %1860 = vmatprep.subr.bf16.mxu0 0
    %1861 = vmatpush1.bf16.msra.mxu0 %v1782
    %1862 = vmatprep.subr.bf16.mxu0 0
    %1863 = vmatpush2.bf16.msra.mxu0 %v1797
    %1864 = vmatprep.subr.bf16.mxu0 0
    %1865 = vmatpush2.bf16.msra.mxu0 %v1796
    %1866 = vmatprep.subr.bf16.mxu0 0
    %1867 = vmatpush2.bf16.msra.mxu0 %v1795
    %1868 = vmatprep.subr.bf16.mxu0 0
    %1869 = vmatpush2.bf16.msra.mxu0 %v1794
    %1870 = vmatprep.subr.bf16.mxu0 0
    %1871 = vmatpush2.bf16.msra.mxu0 %v1793
    %1872 = vmatprep.subr.bf16.mxu0 0
    %1873 = vmatpush2.bf16.msra.mxu0 %v1792
    %1874 = vmatprep.subr.bf16.mxu0 0
    %1875 = vmatpush2.bf16.msra.mxu0 %v1791
    %1876 = vmatprep.subr.bf16.mxu0 0
    %1877 = vmatpush2.bf16.msra.mxu0 %v1790
    %1878 = vmatprep.mubr.bf16.mxu0 %v1583
    %1879 = vmatmul.mubr.bf16.gmra.mxu0 %v1582
    %v1880 = vpop.f32.mrf.mxu0
    %v1881 = vadd.f32 0.0, %v1880
    %v1882 = vpop.f32.mrf.mxu0
    %v1883 = vpop.f32.mrf.mxu0
    %v1884 = vadd.f32 0.0, %v1883
    %v1885 = vpop.f32.mrf.mxu0
    %1886 = vmatprep.mubr.bf16.mxu0 %v1587
    %1887 = vmatmul.mubr.bf16.gmra.mxu0 %v1586
    %v1888 = vpop.f32.mrf.mxu0
    %v1889 = vadd.f32 0.0, %v1888
    %v1890 = vpop.f32.mrf.mxu0
    %v1891 = vpop.f32.mrf.mxu0
    %v1892 = vadd.f32 0.0, %v1891
    %v1893 = vpop.f32.mrf.mxu0
    %1894 = vdwg.mxu0
    %1895 = vmatprep.subr.bf16.mxu0 0
    %1896 = vmatpush1.bf16.msra.mxu0 %v1805
    %1897 = vmatprep.subr.bf16.mxu0 0
    %1898 = vmatpush1.bf16.msra.mxu0 %v1804
    %1899 = vmatprep.subr.bf16.mxu0 0
    %1900 = vmatpush1.bf16.msra.mxu0 %v1803
    %1901 = vmatprep.subr.bf16.mxu0 0
    %1902 = vmatpush1.bf16.msra.mxu0 %v1802
    %1903 = vmatprep.subr.bf16.mxu0 0
    %1904 = vmatpush1.bf16.msra.mxu0 %v1801
    %1905 = vmatprep.subr.bf16.mxu0 0
    %1906 = vmatpush1.bf16.msra.mxu0 %v1800
    %1907 = vmatprep.subr.bf16.mxu0 0
    %1908 = vmatpush1.bf16.msra.mxu0 %v1799
    %1909 = vmatprep.subr.bf16.mxu0 0
    %1910 = vmatpush1.bf16.msra.mxu0 %v1798
    %1911 = vmatprep.subr.bf16.mxu0 0
    %1912 = vmatpush2.bf16.msra.mxu0 %v1813
    %1913 = vmatprep.subr.bf16.mxu0 0
    %1914 = vmatpush2.bf16.msra.mxu0 %v1812
    %1915 = vmatprep.subr.bf16.mxu0 0
    %1916 = vmatpush2.bf16.msra.mxu0 %v1811
    %1917 = vmatprep.subr.bf16.mxu0 0
    %1918 = vmatpush2.bf16.msra.mxu0 %v1810
    %1919 = vmatprep.subr.bf16.mxu0 0
    %1920 = vmatpush2.bf16.msra.mxu0 %v1809
    %1921 = vmatprep.subr.bf16.mxu0 0
    %1922 = vmatpush2.bf16.msra.mxu0 %v1808
    %1923 = vmatprep.subr.bf16.mxu0 0
    %1924 = vmatpush2.bf16.msra.mxu0 %v1807
    %1925 = vmatprep.subr.bf16.mxu0 0
    %1926 = vmatpush2.bf16.msra.mxu0 %v1806
    %1927 = vmatprep.mubr.bf16.mxu0 %v1585
    %1928 = vmatmul.mubr.bf16.gmra.mxu0 %v1584
    %v1929 = vpop.f32.mrf.mxu0
    %v1930 = vadd.f32 %v1881, %v1929
    %v1931 = vpop.f32.mrf.mxu0
    %v1932 = vpop.f32.mrf.mxu0
    %v1933 = vadd.f32 %v1884, %v1932
    %v1934 = vpop.f32.mrf.mxu0
    %1935 = vmatprep.mubr.bf16.mxu0 %v1589
    %1936 = vmatmul.mubr.bf16.gmra.mxu0 %v1588
    %v1937 = vpop.f32.mrf.mxu0
    %v1938 = vadd.f32 %v1889, %v1937
    %v1939 = vpop.f32.mrf.mxu0
    %v1940 = vpop.f32.mrf.mxu0
    %v1941 = vadd.f32 %v1892, %v1940
    %v1942 = vpop.f32.mrf.mxu0
    %1943 = vdwg.mxu0
    %v1944 = vadd.f32 %v1304, %v1930
    %v1945 = vadd.f32 %v1307, %v1933
    %v1946 = vadd.f32 %v1312, %v1938
    %v1947 = vadd.f32 %v1315, %v1941
    %v1948 = vld [vmem:[#allocation2 + $0x60] sm:$0x3f]
    %v1949 = vld [vmem:[%s2 + $0xc] sm:$0x1]
    %v1951 = vlaneseq
    %v1952 = vshrl.u32 %v1951, 7
    %v1953 = vsub.s32 0, %v1952
    %v1954 = vrot.slane %v1949, %v1953
    %v1957 = vsel %vm91, %v1948, 0
    %1959 = vmatprep.subr.mxu0 0.0
    %1960 = vmatpush1.msra.mxu0 0.0
    %1961 = vmatprep.subr.mxu0 0.0
    %1962 = vmatpush1.msra.mxu0 0.0
    %1963 = vmatprep.subr.mxu0 0.0
    %1964 = vmatpush1.msra.mxu0 0.0
    %1965 = vmatprep.subr.mxu0 0.0
    %1966 = vmatpush1.msra.mxu0 0.0
    %1967 = vmatprep.subr.mxu0 0.0
    %1968 = vmatpush1.msra.mxu0 0.0
    %1969 = vmatprep.subr.mxu0 0.0
    %1970 = vmatpush1.msra.mxu0 0.0
    %1971 = vmatprep.subr.mxu0 0.0
    %1972 = vmatpush1.msra.mxu0 0.0
    %1973 = vmatprep.subr.mxu0 0.0
    %1974 = vmatpush1.msra.mxu0 0.0
    %1975 = vmatprep.subr.mxu0 0.0
    %1976 = vmatpush1.msra.mxu0 0.0
    %1977 = vmatprep.subr.mxu0 0.0
    %1978 = vmatpush1.msra.mxu0 0.0
    %1979 = vmatprep.subr.mxu0 0.0
    %1980 = vmatpush1.msra.mxu0 0.0
    %1981 = vmatprep.subr.mxu0 0.0
    %1982 = vmatpush1.msra.mxu0 0.0
    %1983 = vmatprep.subr.mxu0 0.0
    %1984 = vmatpush1.msra.mxu0 0.0
    %1985 = vmatprep.subr.mxu0 0.0
    %1986 = vmatpush1.msra.mxu0 0.0
    %1987 = vmatprep.subr.mxu0 0.0
    %1988 = vmatpush1.msra.mxu0 0.0
    %1989 = vmatprep.subr.mxu0 0.0
    %1990 = vmatpush1.msra.mxu0 %v1957
    %1991 = vmatprep.subr.mxu0 0.0
    %1992 = vmatpush2.msra.mxu0 0.0
    %1993 = vmatprep.subr.mxu0 0.0
    %1994 = vmatpush2.msra.mxu0 0.0
    %1995 = vmatprep.subr.mxu0 0.0
    %1996 = vmatpush2.msra.mxu0 0.0
    %1997 = vmatprep.subr.mxu0 0.0
    %1998 = vmatpush2.msra.mxu0 0.0
    %1999 = vmatprep.subr.mxu0 0.0
    %2000 = vmatpush2.msra.mxu0 0.0
    %2001 = vmatprep.subr.mxu0 0.0
    %2002 = vmatpush2.msra.mxu0 0.0
    %2003 = vmatprep.subr.mxu0 0.0
    %2004 = vmatpush2.msra.mxu0 0.0
    %2005 = vmatprep.subr.mxu0 0.0
    %2006 = vmatpush2.msra.mxu0 0.0
    %2007 = vmatprep.subr.mxu0 0.0
    %2008 = vmatpush2.msra.mxu0 0.0
    %2009 = vmatprep.subr.mxu0 0.0
    %2010 = vmatpush2.msra.mxu0 0.0
    %2011 = vmatprep.subr.mxu0 0.0
    %2012 = vmatpush2.msra.mxu0 0.0
    %2013 = vmatprep.subr.mxu0 0.0
    %2014 = vmatpush2.msra.mxu0 0.0
    %2015 = vmatprep.subr.mxu0 0.0
    %2016 = vmatpush2.msra.mxu0 0.0
    %2017 = vmatprep.subr.mxu0 0.0
    %2018 = vmatpush2.msra.mxu0 0.0
    %2019 = vmatprep.subr.mxu0 0.0
    %2020 = vmatpush2.msra.mxu0 0.0
    %2021 = vmatprep.subr.mxu0 0.0
    %2022 = vmatpush2.msra.mxu0 0.0
    %2023 = vmatprep.mubr.f32.mxu0 0.0
    %2024 = vmatmul.mubr.f32.gmra.mxu0 %v80
    %v2025 = vpop.f32.mrf.mxu0
    %v2026 = vadd.f32 %v1954, %v2025
    %v2027 = vpop.f32.mrf.mxu0
    %2028 = vmatprep.mubr.f32.mxu0 0.0
    %2029 = vmatmul.mubr.f32.gmra.mxu0 %v83
    %v2030 = vpop.f32.mrf.mxu0
    %v2031 = vadd.f32 %v1954, %v2030
    %v2032 = vpop.f32.mrf.mxu0
    %2033 = vmatprep.mubr.f32.mxu0 0.0
    %2034 = vmatmul.mubr.f32.gmra.mxu0 %v86
    %v2035 = vpop.f32.mrf.mxu0
    %v2036 = vadd.f32 %v1954, %v2035
    %v2037 = vpop.f32.mrf.mxu0
    %2038 = vmatprep.mubr.f32.mxu0 0.0
    %2039 = vmatmul.mubr.f32.gmra.mxu0 %v89
    %v2040 = vpop.f32.mrf.mxu0
    %v2041 = vadd.f32 %v1954, %v2040
    %v2042 = vpop.f32.mrf.mxu0
    %2043 = vdwg.mxu0
    %vm2044 = vcmp.ge.f32.partialorder %v2026, 0.0
    %vm2045 = vcmp.ge.f32.partialorder %v2031, 0.0
    %vm2046 = vcmp.ge.f32.partialorder %v2036, 0.0
    %vm2047 = vcmp.ge.f32.partialorder %v2041, 0.0
    %v2048 = vmul.f32 %v2026, 0.01
    %v2049 = vmul.f32 %v2031, 0.01
    %v2050 = vmul.f32 %v2036, 0.01
    %v2051 = vmul.f32 %v2041, 0.01
    %v2052 = vsel %vm2044, %v2026, %v2048
    %v2053 = vsel %vm2045, %v2031, %v2049
    %v2054 = vsel %vm2046, %v2036, %v2050
    %v2055 = vsel %vm2047, %v2041, %v2051
    %v2056 = vpack.c.bf16 %v2053, %v2052
    %v2057 = vpack.c.bf16 %v2055, %v2054
    %v2058 = vld [vmem:[#allocation5 + $0x300] sm:$0xf]
    %v2059 = vld [vmem:[#allocation5 + $0x304] sm:$0xf]
    %v2060 = vld [vmem:[#allocation5 + $0x308] sm:$0xf]
    %v2061 = vld [vmem:[#allocation5 + $0x30c] sm:$0xf]
    %v2062 = vld [vmem:[#allocation5 + $0x310] sm:$0xf]
    %v2063 = vld [vmem:[#allocation5 + $0x314] sm:$0xf]
    %v2064 = vld [vmem:[#allocation5 + $0x318] sm:$0xf]
    %v2065 = vld [vmem:[#allocation5 + $0x31c] sm:$0xf]
    %v2074 = vunpack.c.l.b16 %v2058
    %v2075 = vunpack.c.l.b16 %v2059
    %v2076 = vunpack.c.l.b16 %v2060
    %v2077 = vunpack.c.l.b16 %v2061
    %v2078 = vunpack.c.l.b16 %v2062
    %v2079 = vunpack.c.l.b16 %v2063
    %v2080 = vunpack.c.l.b16 %v2064
    %v2081 = vunpack.c.l.b16 %v2065
    %v2082 = vpack.c.b16 %v2075, %v2074
    %v2083 = vpack.c.b16 %v2077, %v2076
    %v2084 = vpack.c.b16 %v2079, %v2078
    %v2085 = vpack.c.b16 %v2081, %v2080
    %vm2090 = vcmask 523264
    %v2092 = vsel %vm2090, %v2056, 0
    %v2095 = vsel %vm2090, %v2057, 0
    %2097 = vmatprep.subr.bf16.mxu0 0
    %2098 = vmatpush1.bf16.msra.mxu0 0
    %2099 = vmatprep.subr.bf16.mxu0 0
    %2100 = vmatpush1.bf16.msra.mxu0 0
    %2101 = vmatprep.subr.bf16.mxu0 0
    %2102 = vmatpush1.bf16.msra.mxu0 0
    %2103 = vmatprep.subr.bf16.mxu0 0
    %2104 = vmatpush1.bf16.msra.mxu0 0
    %2105 = vmatprep.subr.bf16.mxu0 0
    %2106 = vmatpush1.bf16.msra.mxu0 %v2085
    %2107 = vmatprep.subr.bf16.mxu0 0
    %2108 = vmatpush1.bf16.msra.mxu0 %v2084
    %2109 = vmatprep.subr.bf16.mxu0 0
    %2110 = vmatpush1.bf16.msra.mxu0 %v2083
    %2111 = vmatprep.subr.bf16.mxu0 0
    %2112 = vmatpush1.bf16.msra.mxu0 %v2082
    %2113 = vmatprep.subr.bf16.mxu0 0
    %2114 = vmatpush2.bf16.msra.mxu0 0
    %2115 = vmatprep.subr.bf16.mxu0 0
    %2116 = vmatpush2.bf16.msra.mxu0 0
    %2117 = vmatprep.subr.bf16.mxu0 0
    %2118 = vmatpush2.bf16.msra.mxu0 0
    %2119 = vmatprep.subr.bf16.mxu0 0
    %2120 = vmatpush2.bf16.msra.mxu0 0
    %2121 = vmatprep.subr.bf16.mxu0 0
    %2122 = vmatpush2.bf16.msra.mxu0 0
    %2123 = vmatprep.subr.bf16.mxu0 0
    %2124 = vmatpush2.bf16.msra.mxu0 0
    %2125 = vmatprep.subr.bf16.mxu0 0
    %2126 = vmatpush2.bf16.msra.mxu0 0
    %2127 = vmatprep.subr.bf16.mxu0 0
    %2128 = vmatpush2.bf16.msra.mxu0 0
    %2129 = vmatprep.mubr.bf16.mxu0 0
    %2130 = vmatmul.mubr.bf16.gmra.mxu0 %v2092
    %v2131 = vpop.f32.mrf.mxu0
    %v2132 = vadd.f32 0.0, %v2131
    %v2133 = vpop.f32.mrf.mxu0
    %v2134 = vpop.f32.mrf.mxu0
    %v2135 = vadd.f32 0.0, %v2134
    %v2136 = vpop.f32.mrf.mxu0
    %2137 = vmatprep.mubr.bf16.mxu0 0
    %2138 = vmatmul.mubr.bf16.gmra.mxu0 %v2095
    %v2139 = vpop.f32.mrf.mxu0
    %v2140 = vadd.f32 0.0, %v2139
    %v2141 = vpop.f32.mrf.mxu0
    %v2142 = vpop.f32.mrf.mxu0
    %v2143 = vadd.f32 0.0, %v2142
    %v2144 = vpop.f32.mrf.mxu0
    %2145 = vdwg.mxu0
    %v2146 = vadd.f32 %v1944, %v2132
    %v2147 = vadd.f32 %v1945, %v2135
    %v2148 = vadd.f32 %v1946, %v2140
    %v2149 = vadd.f32 %v1947, %v2143
    %v2150 = vld [vmem:[%s4] sm:$0x1]
    %v2152 = vlaneseq
    %v2153 = vshrl.u32 %v2152, 7
    %v2154 = vsub.s32 0, %v2153
    %v2155 = vrot.slane %v2150, %v2154
    %v2157 = vadd.f32 %v2146, %v2155
    %v2158 = vadd.f32 %v2147, %v2155
    %v2159 = vadd.f32 %v2148, %v2155
    %v2160 = vadd.f32 %v2149, %v2155
    %2161 = vst [vmem:[#allocation7] sm:$0xff] %v2157
    %2162 = vst [vmem:[#allocation7 + $0x8] sm:$0xff] %v2158
    %2163 = vst [vmem:[#allocation7 + $0x10] sm:$0xff] %v2159
    %2164 = vst [vmem:[#allocation7 + $0x18] sm:$0xff] %v2160
    // Predicated region
    $region30: #{tpu_custom_call.1} parent=1 // pred_check
      _
    $region31: #{tpu_custom_call.1} parent=1 // pred_check_branch
      %2166 = sbr.rel (0) target = $region33
    $region32: #{tpu_custom_call.1} parent=1 // pred_region
      %s2168 = ssub.s32 512, 512
      %2169 = vsyncadd [#allocation4], %s2168
      %s2170 = sshll.u32 [#allocation7], 4
      %s2171 = int_to_ptr.vmem [resolvable:$true] %s2170
      %2176 = dma.vmem_to_hbm [thread:$0]  %s2171, 512, %s5, [#allocation4], 128, 128, 8
    $region33: #{tpu_custom_call.1} parent=1 // pred_fallthru
      _
    // Predicated region
    $region34: #{tpu_custom_call.1} parent=1 // pred_check
      _
    $region35: #{tpu_custom_call.1} parent=1 // pred_check_branch
      %2178 = sbr.rel (0) target = $region37
    $region36: #{tpu_custom_call.1} parent=1 // pred_region
      %2179 = dma.done [#allocation4], 512
    $region37: #{tpu_custom_call.1} parent=1 // pred_fallthru
      _
    %2180 = vsyncpa [#allocation3], 1
    %2181 = vsyncpa [#allocation6], 1
    %2182 = vsyncpa [#allocation4], 1

</llo_original>
